<compile_context>
chip_gen: v7x
topology: tpu7x:2x2x1
jax: 0.10.0
libtpu: 0.0.40
codegen_flags: <defaults>
</compile_context>

<pallas_src>
import functools

import jax
import jax.numpy as jnp
from jax.experimental import pallas as pl
from jax.experimental.pallas import tpu as pltpu


def _round_up(x, m):
    return ((x + m - 1) // m) * m


# ----------------------------------------------------------------------------
# Kernel: one branch i per grid step.
#   hidden_i = relu(x @ Wh[:, i*128:(i+1)*128] + bh_i)     (Bp, 128)
#   out_i    = hidden_i @ Wf_i + bf_i                       (Bp, Op)
# ----------------------------------------------------------------------------
def _metanet_kernel(x_ref, wh_ref, bh_ref, wf_ref, bf_ref, o_ref):
    # x_ref : (Bp, K)     input features (constant block index -> stays resident)
    # wh_ref: (K, 128)    hidden-layer weight columns feeding branch i
    # bh_ref: (1, 128)    hidden-layer bias slice for branch i
    # wf_ref: (128, Op)   fc_i weight (transposed, lane-padded to Op)
    # bf_ref: (1, Op)     fc_i bias   (lane-padded to Op)
    # o_ref : (Bp, Op)    branch-i output block
    h = jnp.dot(x_ref[...], wh_ref[...], preferred_element_type=jnp.float32)
    h = jnp.maximum(h + bh_ref[...], 0.0)                      # fused ReLU
    out = jnp.dot(h, wf_ref[...], preferred_element_type=jnp.float32)
    o_ref[...] = (out + bf_ref[...]).astype(o_ref.dtype)


@functools.partial(jax.jit, static_argnames=("names",))
def metanet_forward(mean_std_features, hidden_w, hidden_b, fc_ws, fc_bs, names):
    """Pallas implementation of MetaNet.forward.

    mean_std_features: (B, 1920) float32
    hidden_w:          (128*P, 1920) float32   (PyTorch Linear layout: out, in)
    hidden_b:          (128*P,) float32
    fc_ws:             tuple of P arrays, fc_ws[i]: (params_i, 128)
    fc_bs:             tuple of P arrays, fc_bs[i]: (params_i,)
    names:             tuple of P branch names
    returns:           dict name -> (B, params_i) float32
    """
    b, k = mean_std_features.shape
    p = len(names)
    assert hidden_w.shape == (128 * p, k)
    sizes = tuple(w.shape[0] for w in fc_ws)

    # ---- pack parameters into kernel-friendly layouts (one-time glue) -------
    wh_t = jnp.transpose(hidden_w)                       # (K, 128*P)
    bh = hidden_b.reshape(1, 128 * p)                    # (1, 128*P)

    op = _round_up(max(max(sizes), 1), 128)              # lane-dense output width
    wf_stack = jnp.stack(
        [jnp.pad(jnp.transpose(w), ((0, 0), (0, op - w.shape[0]))) for w in fc_ws],
        axis=0)                                          # (P, 128, Op)
    bf_stack = jnp.stack(
        [jnp.pad(bz, (0, op - bz.shape[0])).reshape(1, op) for bz in fc_bs],
        axis=0)                                          # (P, 1, Op)

    bp = _round_up(b, 8)                                 # sublane-align batch
    x_p = jnp.pad(mean_std_features, ((0, bp - b), (0, 0)))

    # ---- fused Pallas call (both linears + relu) -----------------------------
    out = pl.pallas_call(
        _metanet_kernel,
        out_shape=jax.ShapeDtypeStruct((p, bp, op), jnp.float32),
        grid_spec=pltpu.PrefetchScalarGridSpec(
            num_scalar_prefetch=0,
            grid=(p,),
            in_specs=[
                pl.BlockSpec((bp, k), lambda i: (0, 0)),          # x (resident)
                pl.BlockSpec((k, 128), lambda i: (0, i)),         # Wh columns i
                pl.BlockSpec((1, 128), lambda i: (0, i)),         # bh slice i
                pl.BlockSpec((None, 128, op), lambda i: (i, 0, 0)),  # Wf_i
                pl.BlockSpec((None, 1, op), lambda i: (i, 0, 0)),    # bf_i
            ],
            out_specs=pl.BlockSpec((None, bp, op), lambda i: (i, 0, 0)),
        ),
        compiler_params=pltpu.CompilerParams(
            dimension_semantics=("parallel",)),
    )(x_p, wh_t, bh, wf_stack, bf_stack)

    # ---- per-name slices (required by the dict-of-different-sizes API) ------
    return {name: out[i, :b, :sizes[i]] for i, name in enumerate(names)}


if __name__ == "__main__":
    # Small but representative para_dict (P=3 branches -> grid of 3, feeds
    # both v7x TensorCores). Input feature dim is fixed at 1920 by the module.
    para_dict = {"r11": 64, "r21": 32, "r31": 16}
    names = tuple(para_dict.keys())
    sizes = tuple(para_dict.values())
    p = len(names)
    batch, in_dim = 2, 1920

    key = jax.random.PRNGKey(0)
    ks = jax.random.split(key, 3 + 2 * p)
    x = jax.random.normal(ks[0], (batch, in_dim), dtype=jnp.float32)
    hidden_w = jax.random.normal(ks[1], (128 * p, in_dim), dtype=jnp.float32) * 0.02
    hidden_b = jax.random.normal(ks[2], (128 * p,), dtype=jnp.float32) * 0.1
    fc_ws = tuple(
        jax.random.normal(ks[3 + 2 * i], (sizes[i], 128), dtype=jnp.float32) * 0.05
        for i in range(p))
    fc_bs = tuple(
        jax.random.normal(ks[4 + 2 * i], (sizes[i],), dtype=jnp.float32) * 0.1
        for i in range(p))

    filters = metanet_forward(x, hidden_w, hidden_b, fc_ws, fc_bs, names)
    filters = jax.block_until_ready(filters)

    # Pure-JAX reference (same semantics as MetaNet.forward).
    hidden = jax.nn.relu(x @ hidden_w.T + hidden_b)
    for i, name in enumerate(names):
        ref = hidden[:, i * 128:(i + 1) * 128] @ fc_ws[i].T + fc_bs[i]
        assert filters[name].shape == (batch, sizes[i]), filters[name].shape
        assert jnp.allclose(filters[name], ref, atol=2e-3, rtol=2e-3), name

    print("KERNEL_OK")
</pallas_src>

<mosaic_0001>
module attributes {stable_mosaic.version = 11 : i64} {
  func.func @_metanet_kernel(%arg0: i32, %arg1: memref<8x1920xf32, #tpu.memory_space<vmem>>, %arg2: memref<1920x128xf32, #tpu.memory_space<vmem>>, %arg3: memref<1x128xf32, #tpu.memory_space<vmem>>, %arg4: memref<1x128x128xf32, #tpu.memory_space<vmem>>, %arg5: memref<1x1x128xf32, #tpu.memory_space<vmem>>, %arg6: memref<1x8x128xf32, #tpu.memory_space<vmem>>) attributes {dimension_semantics = [#tpu.dimension_semantics<parallel>], iteration_bounds = array<i64: 3>, scalar_prefetch = 0 : i64, scratch_operands = 0 : i64, tpu.core_type = #tpu.core_type<tc>, window_params = [{pipeline_mode = #tpu.pipeline_mode<synchronous>, transform_indices = @transform_0, window_bounds = array<i64: 8, 1920>}, {transform_indices = @transform_1, window_bounds = array<i64: 1920, 128>}, {transform_indices = @transform_2, window_bounds = array<i64: 1, 128>}, {transform_indices = @transform_3, window_bounds = array<i64: 1, 128, 128>}, {transform_indices = @transform_4, window_bounds = array<i64: 1, 1, 128>}, {transform_indices = @transform_5, window_bounds = array<i64: 1, 8, 128>}]} {
    %c0 = arith.constant 0 : index
    %c0_0 = arith.constant 0 : index
    %0 = vector.load %arg1[%c0, %c0_0] : memref<8x1920xf32, #tpu.memory_space<vmem>>, vector<8x1920xf32>
    %c0_1 = arith.constant 0 : index
    %c0_2 = arith.constant 0 : index
    %1 = vector.load %arg2[%c0_1, %c0_2] : memref<1920x128xf32, #tpu.memory_space<vmem>>, vector<1920x128xf32>
    %cst = arith.constant dense<0.000000e+00> : vector<8x128xf32>
    %2 = tpu.matmul %0, %1, %cst {dimension_numbers = #tpu.dot_dimension_numbers<[1], [0], [0], [1], [0, 0, 1, 1], [], []>} : vector<8x1920xf32>, vector<1920x128xf32>, vector<8x128xf32> -> vector<8x128xf32>
    %c0_3 = arith.constant 0 : index
    %c0_4 = arith.constant 0 : index
    %3 = vector.load %arg3[%c0_3, %c0_4] : memref<1x128xf32, #tpu.memory_space<vmem>>, vector<1x128xf32>
    %4 = vector.broadcast %3 : vector<1x128xf32> to vector<8x128xf32>
    %5 = arith.addf %2, %4 : vector<8x128xf32>
    %cst_5 = arith.constant 0.000000e+00 : f32
    %6 = vector.broadcast %cst_5 : f32 to vector<8x128xf32>
    %7 = arith.maximumf %5, %6 : vector<8x128xf32>
    %c0_6 = arith.constant 0 : index
    %c0_7 = arith.constant 0 : index
    %c0_8 = arith.constant 0 : index
    %8 = vector.load %arg4[%c0_6, %c0_7, %c0_8] : memref<1x128x128xf32, #tpu.memory_space<vmem>>, vector<1x128x128xf32>
    %9 = vector.shape_cast %8 : vector<1x128x128xf32> to vector<128x128xf32>
    %cst_9 = arith.constant dense<0.000000e+00> : vector<8x128xf32>
    %10 = tpu.matmul %7, %9, %cst_9 {dimension_numbers = #tpu.dot_dimension_numbers<[1], [0], [0], [1], [0, 0, 1, 1], [], []>} : vector<8x128xf32>, vector<128x128xf32>, vector<8x128xf32> -> vector<8x128xf32>
    %c0_10 = arith.constant 0 : index
    %c0_11 = arith.constant 0 : index
    %c0_12 = arith.constant 0 : index
    %11 = vector.load %arg5[%c0_10, %c0_11, %c0_12] : memref<1x1x128xf32, #tpu.memory_space<vmem>>, vector<1x1x128xf32>
    %12 = vector.shape_cast %11 : vector<1x1x128xf32> to vector<1x128xf32>
    %13 = vector.broadcast %12 : vector<1x128xf32> to vector<8x128xf32>
    %14 = arith.addf %10, %13 : vector<8x128xf32>
    %c0_13 = arith.constant 0 : index
    %c0_14 = arith.constant 0 : index
    %c0_15 = arith.constant 0 : index
    %15 = vector.load %arg6[%c0_13, %c0_14, %c0_15] : memref<1x8x128xf32, #tpu.memory_space<vmem>>, vector<1x8x128xf32>
    %16 = vector.shape_cast %15 : vector<1x8x128xf32> to vector<8x128xf32>
    %17 = vector.shape_cast %14 : vector<8x128xf32> to vector<1x8x128xf32>
    tpu.vector_store %arg6[%c0_13, %c0_14, %c0_15], %17 {strides = array<i32>} : memref<1x8x128xf32, #tpu.memory_space<vmem>>, vector<1x8x128xf32>,
    return
  }
  func.func @transform_0(%arg0: i32) -> (i32, i32) {
    %c0_i32 = arith.constant 0 : i32
    %c0_i32_0 = arith.constant 0 : i32
    %c0_i32_1 = arith.constant 0 : i32
    return %c0_i32, %c0_i32_0 : i32, i32
  }
  func.func @transform_1(%arg0: i32) -> (i32, i32) {
    %c0_i32 = arith.constant 0 : i32
    %c0_i32_0 = arith.constant 0 : i32
    return %c0_i32, %arg0 : i32, i32
  }
  func.func @transform_2(%arg0: i32) -> (i32, i32) {
    %c0_i32 = arith.constant 0 : i32
    %c0_i32_0 = arith.constant 0 : i32
    return %c0_i32, %arg0 : i32, i32
  }
  func.func @transform_3(%arg0: i32) -> (i32, i32, i32) {
    %c0_i32 = arith.constant 0 : i32
    %c0_i32_0 = arith.constant 0 : i32
    %c0_i32_1 = arith.constant 0 : i32
    return %arg0, %c0_i32, %c0_i32_0 : i32, i32, i32
  }
  func.func @transform_4(%arg0: i32) -> (i32, i32, i32) {
    %c0_i32 = arith.constant 0 : i32
    %c0_i32_0 = arith.constant 0 : i32
    %c0_i32_1 = arith.constant 0 : i32
    return %arg0, %c0_i32, %c0_i32_0 : i32, i32, i32
  }
  func.func @transform_5(%arg0: i32) -> (i32, i32, i32) {
    %c0_i32 = arith.constant 0 : i32
    %c0_i32_0 = arith.constant 0 : i32
    %c0_i32_1 = arith.constant 0 : i32
    return %arg0, %c0_i32, %c0_i32_0 : i32, i32, i32
  }
}

</mosaic_0001>

<llo_original>
// kernel: metanet_forward.1
$region0: #{metanet_forward.1}
  #allocation0 [shape = 'u32[]', space=smem, size = 0x4, offset = 0x4, fixed_abs, tag = 'smem constant byte address 0x4 - core index']
  #allocation1 [shape = 'u32[144,128]{1,0:T(1,128)}', space=vmem, size = 0x12000, scoped, tag = 'internal scratch']
  %s0 = inlined_call_operand.vmem [shape: f32[8,1920], index: 0, kind: input, shape index: {}]
  %s1 = inlined_call_operand.vmem [shape: f32[1920,384], index: 1, kind: input, shape index: {}]
  %s2 = inlined_call_operand.vmem [shape: f32[1,384], index: 2, kind: input, shape index: {}]
  %s3 = inlined_call_operand.vmem [shape: f32[3,128,128], index: 3, kind: input, shape index: {}]
  %s4 = inlined_call_operand.vmem [shape: f32[3,1,128], index: 4, kind: input, shape index: {}]
  %s5 = inlined_call_operand.vmem [shape: f32[3,8,128], index: 5, kind: output, shape index: {}]
  %s6 = sld [smem:[#allocation0]]
  $region91: #{metanet_forward.1} parent=0
    _
  %s8 = ssub.s32 1, %s6
  %s9 = scalar_select 0, %s8, %s6
  $region1: #{metanet_forward.1} parent=0
    #allocation2 [shape = 'u8[1966080]{0}', space=vmem, size = 0x1e0000, scoped, tag = 'input window, operand 1']
    loop: start=0, step=1, limit=5
    $region2: #{metanet_forward.1} parent=1 // loop_pre_header
      _
    $region3: #{metanet_forward.1} parent=1 // loop_header
      %s11 = sphi 0, %s15
      %p12 = scmp.ge.s32.totalorder %s11, 5
      %s19 = sphi 0, %s19
      %s21 = sphi 0, %s19
      %s22 = sphi 0, %s21
      %s36 = sphi 0, %s22
      %s42 = sphi 0, %s44
      %s45 = sphi 0, %s42
      %s46 = sphi 0, %s45
      %s62 = sphi 0, %s46
      %s68 = sphi 0, %s70
      %s71 = sphi 0, %s68
      %s72 = sphi 0, %s71
      %s88 = sphi 0, %s72
      %s94 = sphi 0, %s96
      %s97 = sphi 0, %s94
      %s98 = sphi 0, %s97
      %s114 = sphi 0, %s98
      %s120 = sphi 0, %s122
      %s123 = sphi 0, %s120
      %s124 = sphi 0, %s123
      %s140 = sphi 0, %s124
      %s146 = sphi 0, %s148
      %s149 = sphi 0, %s146
      %s150 = sphi 0, %s149
      %s166 = sphi 0, %s150
    $region4: #{metanet_forward.1} parent=1 // loop_header_branch
      %14 = sbr.rel (%p12) target = $region8
    $region5: #{metanet_forward.1} parent=1 // loop_body
      %s16 = ssub.s32 %s11, 1
      %s17 = ssub.s32 %s11, 2
      %s18 = sadd.s32 %s11, 1
      %s20 = sadd.s32 %s19, 1
      %p23 = scmp.eq.s32.totalorder %s11, 2
      %p24 = scmp.ne.s32.totalorder %s19, %s21
      %p25 = scmp.eq.s32.totalorder %s11, 0
      %p26 = por %p24, %p25
      %p27 = scmp.ne.s32.totalorder %s19, %s21
      %p28 = scmp.eq.s32.totalorder %s16, 2
      %p29 = por %p27, %p28
      %p30 = scmp.ne.s32.totalorder %s21, %s22
      %p31 = scmp.eq.s32.totalorder %s16, 0
      %p32 = por %p30, %p31
      %p33 = scmp.ne.s32.totalorder %s21, %s22
      %p34 = scmp.eq.s32.totalorder %s17, 2
      %p35 = por %p33, %p34
      %p37 = scmp.ne.s32.totalorder %s22, %s36
      %p38 = scmp.eq.s32.totalorder %s17, 0
      %p39 = por %p37, %p38
      %s40 = ssub.s32 %s11, %s18
      %p41 = scmp.eq.s32.totalorder %s40, 0
      %s43 = sadd.s32 %s42, 1
      %s44 = scalar_select %p41, %s42, %s43
      %p47 = pneg %p41
      %p48 = scmp.eq.s32.totalorder %s11, 2
      %p49 = por %p47, %p48
      %p50 = scmp.ne.s32.totalorder %s42, %s45
      %p51 = scmp.eq.s32.totalorder %s11, 0
      %p52 = por %p50, %p51
      %p53 = scmp.ne.s32.totalorder %s42, %s45
      %p54 = scmp.eq.s32.totalorder %s16, 2
      %p55 = por %p53, %p54
      %p56 = scmp.ne.s32.totalorder %s45, %s46
      %p57 = scmp.eq.s32.totalorder %s16, 0
      %p58 = por %p56, %p57
      %p59 = scmp.ne.s32.totalorder %s45, %s46
      %p60 = scmp.eq.s32.totalorder %s17, 2
      %p61 = por %p59, %p60
      %p63 = scmp.ne.s32.totalorder %s46, %s62
      %p64 = scmp.eq.s32.totalorder %s17, 0
      %p65 = por %p63, %p64
      %s66 = ssub.s32 %s11, %s18
      %p67 = scmp.eq.s32.totalorder %s66, 0
      %s69 = sadd.s32 %s68, 1
      %s70 = scalar_select %p67, %s68, %s69
      %p73 = pneg %p67
      %p74 = scmp.eq.s32.totalorder %s11, 2
      %p75 = por %p73, %p74
      %p76 = scmp.ne.s32.totalorder %s68, %s71
      %p77 = scmp.eq.s32.totalorder %s11, 0
      %p78 = por %p76, %p77
      %p79 = scmp.ne.s32.totalorder %s68, %s71
      %p80 = scmp.eq.s32.totalorder %s16, 2
      %p81 = por %p79, %p80
      %p82 = scmp.ne.s32.totalorder %s71, %s72
      %p83 = scmp.eq.s32.totalorder %s16, 0
      %p84 = por %p82, %p83
      %p85 = scmp.ne.s32.totalorder %s71, %s72
      %p86 = scmp.eq.s32.totalorder %s17, 2
      %p87 = por %p85, %p86
      %p89 = scmp.ne.s32.totalorder %s72, %s88
      %p90 = scmp.eq.s32.totalorder %s17, 0
      %p91 = por %p89, %p90
      %s92 = ssub.s32 %s11, %s18
      %p93 = scmp.eq.s32.totalorder %s92, 0
      %s95 = sadd.s32 %s94, 1
      %s96 = scalar_select %p93, %s94, %s95
      %p99 = pneg %p93
      %p100 = scmp.eq.s32.totalorder %s11, 2
      %p101 = por %p99, %p100
      %p102 = scmp.ne.s32.totalorder %s94, %s97
      %p103 = scmp.eq.s32.totalorder %s11, 0
      %p104 = por %p102, %p103
      %p105 = scmp.ne.s32.totalorder %s94, %s97
      %p106 = scmp.eq.s32.totalorder %s16, 2
      %p107 = por %p105, %p106
      %p108 = scmp.ne.s32.totalorder %s97, %s98
      %p109 = scmp.eq.s32.totalorder %s16, 0
      %p110 = por %p108, %p109
      %p111 = scmp.ne.s32.totalorder %s97, %s98
      %p112 = scmp.eq.s32.totalorder %s17, 2
      %p113 = por %p111, %p112
      %p115 = scmp.ne.s32.totalorder %s98, %s114
      %p116 = scmp.eq.s32.totalorder %s17, 0
      %p117 = por %p115, %p116
      %s118 = ssub.s32 %s11, %s18
      %p119 = scmp.eq.s32.totalorder %s118, 0
      %s121 = sadd.s32 %s120, 1
      %s122 = scalar_select %p119, %s120, %s121
      %p125 = pneg %p119
      %p126 = scmp.eq.s32.totalorder %s11, 2
      %p127 = por %p125, %p126
      %p128 = scmp.ne.s32.totalorder %s120, %s123
      %p129 = scmp.eq.s32.totalorder %s11, 0
      %p130 = por %p128, %p129
      %p131 = scmp.ne.s32.totalorder %s120, %s123
      %p132 = scmp.eq.s32.totalorder %s16, 2
      %p133 = por %p131, %p132
      %p134 = scmp.ne.s32.totalorder %s123, %s124
      %p135 = scmp.eq.s32.totalorder %s16, 0
      %p136 = por %p134, %p135
      %p137 = scmp.ne.s32.totalorder %s123, %s124
      %p138 = scmp.eq.s32.totalorder %s17, 2
      %p139 = por %p137, %p138
      %p141 = scmp.ne.s32.totalorder %s124, %s140
      %p142 = scmp.eq.s32.totalorder %s17, 0
      %p143 = por %p141, %p142
      %s144 = ssub.s32 %s11, %s18
      %p145 = scmp.eq.s32.totalorder %s144, 0
      %s147 = sadd.s32 %s146, 1
      %s148 = scalar_select %p145, %s146, %s147
      %p151 = pneg %p145
      %p152 = scmp.eq.s32.totalorder %s11, 2
      %p153 = por %p151, %p152
      %p154 = scmp.ne.s32.totalorder %s146, %s149
      %p155 = scmp.eq.s32.totalorder %s11, 0
      %p156 = por %p154, %p155
      %p157 = scmp.ne.s32.totalorder %s146, %s149
      %p158 = scmp.eq.s32.totalorder %s16, 2
      %p159 = por %p157, %p158
      %p160 = scmp.ne.s32.totalorder %s149, %s150
      %p161 = scmp.eq.s32.totalorder %s16, 0
      %p162 = por %p160, %p161
      %p163 = scmp.ne.s32.totalorder %s149, %s150
      %p164 = scmp.eq.s32.totalorder %s17, 2
      %p165 = por %p163, %p164
      %p167 = scmp.ne.s32.totalorder %s150, %s166
      %p168 = scmp.eq.s32.totalorder %s17, 0
      %p169 = por %p167, %p168
      %p170 = scmp.le.s32.totalorder 1, %s11
      %p171 = scmp.lt.s32.totalorder %s11, 4
      %p172 = pnand %p170, %p171
      %p173 = pneg %p172
      // Predicated region
      $region9: #{metanet_forward.1} parent=5 // pred_check
        _
      $region10: #{metanet_forward.1} parent=5 // pred_check_branch
        %175 = sbr.rel (%p172) target = $region12
      $region11: #{metanet_forward.1} parent=5 // pred_region
        %s176 = ssub.s32 %s11, 1
        // Predicated region
        $region13: #{metanet_forward.1} parent=11 // pred_check
          %p177 = pneg %p32
        $region14: #{metanet_forward.1} parent=11 // pred_check_branch
          %179 = sbr.rel (%p177) target = $region16
        $region15: #{metanet_forward.1} parent=11 // pred_region
          _
        $region16: #{metanet_forward.1} parent=11 // pred_fallthru
          _
      $region12: #{metanet_forward.1} parent=5 // pred_fallthru
        _
      %p180 = scmp.lt.s32.totalorder %s11, 3
      // Predicated region
      $region17: #{metanet_forward.1} parent=5 // pred_check
        %p181 = pneg %p180
      $region18: #{metanet_forward.1} parent=5 // pred_check_branch
        %183 = sbr.rel (%p181) target = $region20
      $region19: #{metanet_forward.1} parent=5 // pred_region
        // Predicated region
        $region21: #{metanet_forward.1} parent=19 // pred_check
          %p184 = pneg %p52
        $region22: #{metanet_forward.1} parent=19 // pred_check_branch
          %186 = sbr.rel (%p184) target = $region24
        $region23: #{metanet_forward.1} parent=19 // pred_region
          %s187 = sand.u32 %s42, 1
          %s188 = sand.u32 %s42, 1
          %s189 = smul.addr %s188, 1920
          %s190 = scalar_lea.vmem [#allocation2], %s189
          %s191 = smul.addr %s11, 8
          %s192 = scalar_lea.vmem %s1, %s191
          // Predicated region
          $region25: #{metanet_forward.1} parent=23 // pred_check
            _
          $region26: #{metanet_forward.1} parent=23 // pred_check_branch
            %194 = sbr.rel (0) target = $region28
          $region27: #{metanet_forward.1} parent=23 // pred_region
            // Predicated region
            $region29: #{metanet_forward.1} parent=27 // pred_check
              _
            $region30: #{metanet_forward.1} parent=27 // pred_check_branch
              %196 = sbr.rel (0) target = $region32
            $region31: #{metanet_forward.1} parent=27 // pred_region
              // Predicated region
              $region44: #{metanet_forward.1} parent=31 // pred_check
                _
              $region45: #{metanet_forward.1} parent=31 // pred_check_branch
                %689 = sbr.rel (0) target = $region47
              $region46: #{metanet_forward.1} parent=31 // pred_region
                loop: start=0, step=1, limit=1
                $region48: #{metanet_forward.1} parent=46 // loop_pre_header
                  _
                $region49: #{metanet_forward.1} parent=46 // loop_header
                  %s691 = sphi 0, %s695
                  %p692 = scmp.ge.s32.totalorder %s691, 1
                  %s696 = sphi %s192, %s192
                  %s697 = sphi %s190, %s190
                $region50: #{metanet_forward.1} parent=46 // loop_header_branch
                  %694 = sbr.rel (%p692) target = $region54
                $region51: #{metanet_forward.1} parent=46 // loop_body
                  %v698 = vld [vmem:[%s696] sm:$0xff]
                  %699 = vst [vmem:[%s697] sm:$0xff] %v698
                  %v700 = vld [vmem:[%s696 + $0x18] sm:$0xff]
                  %701 = vst [vmem:[%s697 + $0x8] sm:$0xff] %v700
                  %v702 = vld [vmem:[%s696 + $0x30] sm:$0xff]
                  %703 = vst [vmem:[%s697 + $0x10] sm:$0xff] %v702
                  %v704 = vld [vmem:[%s696 + $0x48] sm:$0xff]
                  %705 = vst [vmem:[%s697 + $0x18] sm:$0xff] %v704
                  %v706 = vld [vmem:[%s696 + $0x60] sm:$0xff]
                  %707 = vst [vmem:[%s697 + $0x20] sm:$0xff] %v706
                  %v708 = vld [vmem:[%s696 + $0x78] sm:$0xff]
                  %709 = vst [vmem:[%s697 + $0x28] sm:$0xff] %v708
                  %v710 = vld [vmem:[%s696 + $0x90] sm:$0xff]
                  %711 = vst [vmem:[%s697 + $0x30] sm:$0xff] %v710
                  %v712 = vld [vmem:[%s696 + $0xa8] sm:$0xff]
                  %713 = vst [vmem:[%s697 + $0x38] sm:$0xff] %v712
                  %v714 = vld [vmem:[%s696 + $0xc0] sm:$0xff]
                  %715 = vst [vmem:[%s697 + $0x40] sm:$0xff] %v714
                  %v716 = vld [vmem:[%s696 + $0xd8] sm:$0xff]
                  %717 = vst [vmem:[%s697 + $0x48] sm:$0xff] %v716
                  %v718 = vld [vmem:[%s696 + $0xf0] sm:$0xff]
                  %719 = vst [vmem:[%s697 + $0x50] sm:$0xff] %v718
                  %v720 = vld [vmem:[%s696 + $0x108] sm:$0xff]
                  %721 = vst [vmem:[%s697 + $0x58] sm:$0xff] %v720
                  %v722 = vld [vmem:[%s696 + $0x120] sm:$0xff]
                  %723 = vst [vmem:[%s697 + $0x60] sm:$0xff] %v722
                  %v724 = vld [vmem:[%s696 + $0x138] sm:$0xff]
                  %725 = vst [vmem:[%s697 + $0x68] sm:$0xff] %v724
                  %v726 = vld [vmem:[%s696 + $0x150] sm:$0xff]
                  %727 = vst [vmem:[%s697 + $0x70] sm:$0xff] %v726
                  %v728 = vld [vmem:[%s696 + $0x168] sm:$0xff]
                  %729 = vst [vmem:[%s697 + $0x78] sm:$0xff] %v728
                  %v730 = vld [vmem:[%s696 + $0x180] sm:$0xff]
                  %731 = vst [vmem:[%s697 + $0x80] sm:$0xff] %v730
                  %v732 = vld [vmem:[%s696 + $0x198] sm:$0xff]
                  %733 = vst [vmem:[%s697 + $0x88] sm:$0xff] %v732
                  %v734 = vld [vmem:[%s696 + $0x1b0] sm:$0xff]
                  %735 = vst [vmem:[%s697 + $0x90] sm:$0xff] %v734
                  %v736 = vld [vmem:[%s696 + $0x1c8] sm:$0xff]
                  %737 = vst [vmem:[%s697 + $0x98] sm:$0xff] %v736
                  %v738 = vld [vmem:[%s696 + $0x1e0] sm:$0xff]
                  %739 = vst [vmem:[%s697 + $0xa0] sm:$0xff] %v738
                  %v740 = vld [vmem:[%s696 + $0x1f8] sm:$0xff]
                  %741 = vst [vmem:[%s697 + $0xa8] sm:$0xff] %v740
                  %v742 = vld [vmem:[%s696 + $0x210] sm:$0xff]
                  %743 = vst [vmem:[%s697 + $0xb0] sm:$0xff] %v742
                  %v744 = vld [vmem:[%s696 + $0x228] sm:$0xff]
                  %745 = vst [vmem:[%s697 + $0xb8] sm:$0xff] %v744
                  %v746 = vld [vmem:[%s696 + $0x240] sm:$0xff]
                  %747 = vst [vmem:[%s697 + $0xc0] sm:$0xff] %v746
                  %v748 = vld [vmem:[%s696 + $0x258] sm:$0xff]
                  %749 = vst [vmem:[%s697 + $0xc8] sm:$0xff] %v748
                  %v750 = vld [vmem:[%s696 + $0x270] sm:$0xff]
                  %751 = vst [vmem:[%s697 + $0xd0] sm:$0xff] %v750
                  %v752 = vld [vmem:[%s696 + $0x288] sm:$0xff]
                  %753 = vst [vmem:[%s697 + $0xd8] sm:$0xff] %v752
                  %v754 = vld [vmem:[%s696 + $0x2a0] sm:$0xff]
                  %755 = vst [vmem:[%s697 + $0xe0] sm:$0xff] %v754
                  %v756 = vld [vmem:[%s696 + $0x2b8] sm:$0xff]
                  %757 = vst [vmem:[%s697 + $0xe8] sm:$0xff] %v756
                  %v758 = vld [vmem:[%s696 + $0x2d0] sm:$0xff]
                  %759 = vst [vmem:[%s697 + $0xf0] sm:$0xff] %v758
                  %v760 = vld [vmem:[%s696 + $0x2e8] sm:$0xff]
                  %761 = vst [vmem:[%s697 + $0xf8] sm:$0xff] %v760
                  %v762 = vld [vmem:[%s696 + $0x300] sm:$0xff]
                  %763 = vst [vmem:[%s697 + $0x100] sm:$0xff] %v762
                  %v764 = vld [vmem:[%s696 + $0x318] sm:$0xff]
                  %765 = vst [vmem:[%s697 + $0x108] sm:$0xff] %v764
                  %v766 = vld [vmem:[%s696 + $0x330] sm:$0xff]
                  %767 = vst [vmem:[%s697 + $0x110] sm:$0xff] %v766
                  %v768 = vld [vmem:[%s696 + $0x348] sm:$0xff]
                  %769 = vst [vmem:[%s697 + $0x118] sm:$0xff] %v768
                  %v770 = vld [vmem:[%s696 + $0x360] sm:$0xff]
                  %771 = vst [vmem:[%s697 + $0x120] sm:$0xff] %v770
                  %v772 = vld [vmem:[%s696 + $0x378] sm:$0xff]
                  %773 = vst [vmem:[%s697 + $0x128] sm:$0xff] %v772
                  %v774 = vld [vmem:[%s696 + $0x390] sm:$0xff]
                  %775 = vst [vmem:[%s697 + $0x130] sm:$0xff] %v774
                  %v776 = vld [vmem:[%s696 + $0x3a8] sm:$0xff]
                  %777 = vst [vmem:[%s697 + $0x138] sm:$0xff] %v776
                  %v778 = vld [vmem:[%s696 + $0x3c0] sm:$0xff]
                  %779 = vst [vmem:[%s697 + $0x140] sm:$0xff] %v778
                  %v780 = vld [vmem:[%s696 + $0x3d8] sm:$0xff]
                  %781 = vst [vmem:[%s697 + $0x148] sm:$0xff] %v780
                  %v782 = vld [vmem:[%s696 + $0x3f0] sm:$0xff]
                  %783 = vst [vmem:[%s697 + $0x150] sm:$0xff] %v782
                  %v784 = vld [vmem:[%s696 + $0x408] sm:$0xff]
                  %785 = vst [vmem:[%s697 + $0x158] sm:$0xff] %v784
                  %v786 = vld [vmem:[%s696 + $0x420] sm:$0xff]
                  %787 = vst [vmem:[%s697 + $0x160] sm:$0xff] %v786
                  %v788 = vld [vmem:[%s696 + $0x438] sm:$0xff]
                  %789 = vst [vmem:[%s697 + $0x168] sm:$0xff] %v788
                  %v790 = vld [vmem:[%s696 + $0x450] sm:$0xff]
                  %791 = vst [vmem:[%s697 + $0x170] sm:$0xff] %v790
                  %v792 = vld [vmem:[%s696 + $0x468] sm:$0xff]
                  %793 = vst [vmem:[%s697 + $0x178] sm:$0xff] %v792
                  %v794 = vld [vmem:[%s696 + $0x480] sm:$0xff]
                  %795 = vst [vmem:[%s697 + $0x180] sm:$0xff] %v794
                  %v796 = vld [vmem:[%s696 + $0x498] sm:$0xff]
                  %797 = vst [vmem:[%s697 + $0x188] sm:$0xff] %v796
                  %v798 = vld [vmem:[%s696 + $0x4b0] sm:$0xff]
                  %799 = vst [vmem:[%s697 + $0x190] sm:$0xff] %v798
                  %v800 = vld [vmem:[%s696 + $0x4c8] sm:$0xff]
                  %801 = vst [vmem:[%s697 + $0x198] sm:$0xff] %v800
                  %v802 = vld [vmem:[%s696 + $0x4e0] sm:$0xff]
                  %803 = vst [vmem:[%s697 + $0x1a0] sm:$0xff] %v802
                  %v804 = vld [vmem:[%s696 + $0x4f8] sm:$0xff]
                  %805 = vst [vmem:[%s697 + $0x1a8] sm:$0xff] %v804
                  %v806 = vld [vmem:[%s696 + $0x510] sm:$0xff]
                  %807 = vst [vmem:[%s697 + $0x1b0] sm:$0xff] %v806
                  %v808 = vld [vmem:[%s696 + $0x528] sm:$0xff]
                  %809 = vst [vmem:[%s697 + $0x1b8] sm:$0xff] %v808
                  %v810 = vld [vmem:[%s696 + $0x540] sm:$0xff]
                  %811 = vst [vmem:[%s697 + $0x1c0] sm:$0xff] %v810
                  %v812 = vld [vmem:[%s696 + $0x558] sm:$0xff]
                  %813 = vst [vmem:[%s697 + $0x1c8] sm:$0xff] %v812
                  %v814 = vld [vmem:[%s696 + $0x570] sm:$0xff]
                  %815 = vst [vmem:[%s697 + $0x1d0] sm:$0xff] %v814
                  %v816 = vld [vmem:[%s696 + $0x588] sm:$0xff]
                  %817 = vst [vmem:[%s697 + $0x1d8] sm:$0xff] %v816
                  %v818 = vld [vmem:[%s696 + $0x5a0] sm:$0xff]
                  %819 = vst [vmem:[%s697 + $0x1e0] sm:$0xff] %v818
                  %v820 = vld [vmem:[%s696 + $0x5b8] sm:$0xff]
                  %821 = vst [vmem:[%s697 + $0x1e8] sm:$0xff] %v820
                  %v822 = vld [vmem:[%s696 + $0x5d0] sm:$0xff]
                  %823 = vst [vmem:[%s697 + $0x1f0] sm:$0xff] %v822
                  %v824 = vld [vmem:[%s696 + $0x5e8] sm:$0xff]
                  %825 = vst [vmem:[%s697 + $0x1f8] sm:$0xff] %v824
                  %v826 = vld [vmem:[%s696 + $0x600] sm:$0xff]
                  %827 = vst [vmem:[%s697 + $0x200] sm:$0xff] %v826
                  %v828 = vld [vmem:[%s696 + $0x618] sm:$0xff]
                  %829 = vst [vmem:[%s697 + $0x208] sm:$0xff] %v828
                  %v830 = vld [vmem:[%s696 + $0x630] sm:$0xff]
                  %831 = vst [vmem:[%s697 + $0x210] sm:$0xff] %v830
                  %v832 = vld [vmem:[%s696 + $0x648] sm:$0xff]
                  %833 = vst [vmem:[%s697 + $0x218] sm:$0xff] %v832
                  %v834 = vld [vmem:[%s696 + $0x660] sm:$0xff]
                  %835 = vst [vmem:[%s697 + $0x220] sm:$0xff] %v834
                  %v836 = vld [vmem:[%s696 + $0x678] sm:$0xff]
                  %837 = vst [vmem:[%s697 + $0x228] sm:$0xff] %v836
                  %v838 = vld [vmem:[%s696 + $0x690] sm:$0xff]
                  %839 = vst [vmem:[%s697 + $0x230] sm:$0xff] %v838
                  %v840 = vld [vmem:[%s696 + $0x6a8] sm:$0xff]
                  %841 = vst [vmem:[%s697 + $0x238] sm:$0xff] %v840
                  %v842 = vld [vmem:[%s696 + $0x6c0] sm:$0xff]
                  %843 = vst [vmem:[%s697 + $0x240] sm:$0xff] %v842
                  %v844 = vld [vmem:[%s696 + $0x6d8] sm:$0xff]
                  %845 = vst [vmem:[%s697 + $0x248] sm:$0xff] %v844
                  %v846 = vld [vmem:[%s696 + $0x6f0] sm:$0xff]
                  %847 = vst [vmem:[%s697 + $0x250] sm:$0xff] %v846
                  %v848 = vld [vmem:[%s696 + $0x708] sm:$0xff]
                  %849 = vst [vmem:[%s697 + $0x258] sm:$0xff] %v848
                  %v850 = vld [vmem:[%s696 + $0x720] sm:$0xff]
                  %851 = vst [vmem:[%s697 + $0x260] sm:$0xff] %v850
                  %v852 = vld [vmem:[%s696 + $0x738] sm:$0xff]
                  %853 = vst [vmem:[%s697 + $0x268] sm:$0xff] %v852
                  %v854 = vld [vmem:[%s696 + $0x750] sm:$0xff]
                  %855 = vst [vmem:[%s697 + $0x270] sm:$0xff] %v854
                  %v856 = vld [vmem:[%s696 + $0x768] sm:$0xff]
                  %857 = vst [vmem:[%s697 + $0x278] sm:$0xff] %v856
                  %v858 = vld [vmem:[%s696 + $0x780] sm:$0xff]
                  %859 = vst [vmem:[%s697 + $0x280] sm:$0xff] %v858
                  %v860 = vld [vmem:[%s696 + $0x798] sm:$0xff]
                  %861 = vst [vmem:[%s697 + $0x288] sm:$0xff] %v860
                  %v862 = vld [vmem:[%s696 + $0x7b0] sm:$0xff]
                  %863 = vst [vmem:[%s697 + $0x290] sm:$0xff] %v862
                  %v864 = vld [vmem:[%s696 + $0x7c8] sm:$0xff]
                  %865 = vst [vmem:[%s697 + $0x298] sm:$0xff] %v864
                  %v866 = vld [vmem:[%s696 + $0x7e0] sm:$0xff]
                  %867 = vst [vmem:[%s697 + $0x2a0] sm:$0xff] %v866
                  %v868 = vld [vmem:[%s696 + $0x7f8] sm:$0xff]
                  %869 = vst [vmem:[%s697 + $0x2a8] sm:$0xff] %v868
                  %v870 = vld [vmem:[%s696 + $0x810] sm:$0xff]
                  %871 = vst [vmem:[%s697 + $0x2b0] sm:$0xff] %v870
                  %v872 = vld [vmem:[%s696 + $0x828] sm:$0xff]
                  %873 = vst [vmem:[%s697 + $0x2b8] sm:$0xff] %v872
                  %v874 = vld [vmem:[%s696 + $0x840] sm:$0xff]
                  %875 = vst [vmem:[%s697 + $0x2c0] sm:$0xff] %v874
                  %v876 = vld [vmem:[%s696 + $0x858] sm:$0xff]
                  %877 = vst [vmem:[%s697 + $0x2c8] sm:$0xff] %v876
                  %v878 = vld [vmem:[%s696 + $0x870] sm:$0xff]
                  %879 = vst [vmem:[%s697 + $0x2d0] sm:$0xff] %v878
                  %v880 = vld [vmem:[%s696 + $0x888] sm:$0xff]
                  %881 = vst [vmem:[%s697 + $0x2d8] sm:$0xff] %v880
                  %v882 = vld [vmem:[%s696 + $0x8a0] sm:$0xff]
                  %883 = vst [vmem:[%s697 + $0x2e0] sm:$0xff] %v882
                  %v884 = vld [vmem:[%s696 + $0x8b8] sm:$0xff]
                  %885 = vst [vmem:[%s697 + $0x2e8] sm:$0xff] %v884
                  %v886 = vld [vmem:[%s696 + $0x8d0] sm:$0xff]
                  %887 = vst [vmem:[%s697 + $0x2f0] sm:$0xff] %v886
                  %v888 = vld [vmem:[%s696 + $0x8e8] sm:$0xff]
                  %889 = vst [vmem:[%s697 + $0x2f8] sm:$0xff] %v888
                  %v890 = vld [vmem:[%s696 + $0x900] sm:$0xff]
                  %891 = vst [vmem:[%s697 + $0x300] sm:$0xff] %v890
                  %v892 = vld [vmem:[%s696 + $0x918] sm:$0xff]
                  %893 = vst [vmem:[%s697 + $0x308] sm:$0xff] %v892
                  %v894 = vld [vmem:[%s696 + $0x930] sm:$0xff]
                  %895 = vst [vmem:[%s697 + $0x310] sm:$0xff] %v894
                  %v896 = vld [vmem:[%s696 + $0x948] sm:$0xff]
                  %897 = vst [vmem:[%s697 + $0x318] sm:$0xff] %v896
                  %v898 = vld [vmem:[%s696 + $0x960] sm:$0xff]
                  %899 = vst [vmem:[%s697 + $0x320] sm:$0xff] %v898
                  %v900 = vld [vmem:[%s696 + $0x978] sm:$0xff]
                  %901 = vst [vmem:[%s697 + $0x328] sm:$0xff] %v900
                  %v902 = vld [vmem:[%s696 + $0x990] sm:$0xff]
                  %903 = vst [vmem:[%s697 + $0x330] sm:$0xff] %v902
                  %v904 = vld [vmem:[%s696 + $0x9a8] sm:$0xff]
                  %905 = vst [vmem:[%s697 + $0x338] sm:$0xff] %v904
                  %v906 = vld [vmem:[%s696 + $0x9c0] sm:$0xff]
                  %907 = vst [vmem:[%s697 + $0x340] sm:$0xff] %v906
                  %v908 = vld [vmem:[%s696 + $0x9d8] sm:$0xff]
                  %909 = vst [vmem:[%s697 + $0x348] sm:$0xff] %v908
                  %v910 = vld [vmem:[%s696 + $0x9f0] sm:$0xff]
                  %911 = vst [vmem:[%s697 + $0x350] sm:$0xff] %v910
                  %v912 = vld [vmem:[%s696 + $0xa08] sm:$0xff]
                  %913 = vst [vmem:[%s697 + $0x358] sm:$0xff] %v912
                  %v914 = vld [vmem:[%s696 + $0xa20] sm:$0xff]
                  %915 = vst [vmem:[%s697 + $0x360] sm:$0xff] %v914
                  %v916 = vld [vmem:[%s696 + $0xa38] sm:$0xff]
                  %917 = vst [vmem:[%s697 + $0x368] sm:$0xff] %v916
                  %v918 = vld [vmem:[%s696 + $0xa50] sm:$0xff]
                  %919 = vst [vmem:[%s697 + $0x370] sm:$0xff] %v918
                  %v920 = vld [vmem:[%s696 + $0xa68] sm:$0xff]
                  %921 = vst [vmem:[%s697 + $0x378] sm:$0xff] %v920
                  %v922 = vld [vmem:[%s696 + $0xa80] sm:$0xff]
                  %923 = vst [vmem:[%s697 + $0x380] sm:$0xff] %v922
                  %v924 = vld [vmem:[%s696 + $0xa98] sm:$0xff]
                  %925 = vst [vmem:[%s697 + $0x388] sm:$0xff] %v924
                  %v926 = vld [vmem:[%s696 + $0xab0] sm:$0xff]
                  %927 = vst [vmem:[%s697 + $0x390] sm:$0xff] %v926
                  %v928 = vld [vmem:[%s696 + $0xac8] sm:$0xff]
                  %929 = vst [vmem:[%s697 + $0x398] sm:$0xff] %v928
                  %v930 = vld [vmem:[%s696 + $0xae0] sm:$0xff]
                  %931 = vst [vmem:[%s697 + $0x3a0] sm:$0xff] %v930
                  %v932 = vld [vmem:[%s696 + $0xaf8] sm:$0xff]
                  %933 = vst [vmem:[%s697 + $0x3a8] sm:$0xff] %v932
                  %v934 = vld [vmem:[%s696 + $0xb10] sm:$0xff]
                  %935 = vst [vmem:[%s697 + $0x3b0] sm:$0xff] %v934
                  %v936 = vld [vmem:[%s696 + $0xb28] sm:$0xff]
                  %937 = vst [vmem:[%s697 + $0x3b8] sm:$0xff] %v936
                  %v938 = vld [vmem:[%s696 + $0xb40] sm:$0xff]
                  %939 = vst [vmem:[%s697 + $0x3c0] sm:$0xff] %v938
                  %v940 = vld [vmem:[%s696 + $0xb58] sm:$0xff]
                  %941 = vst [vmem:[%s697 + $0x3c8] sm:$0xff] %v940
                  %v942 = vld [vmem:[%s696 + $0xb70] sm:$0xff]
                  %943 = vst [vmem:[%s697 + $0x3d0] sm:$0xff] %v942
                  %v944 = vld [vmem:[%s696 + $0xb88] sm:$0xff]
                  %945 = vst [vmem:[%s697 + $0x3d8] sm:$0xff] %v944
                  %v946 = vld [vmem:[%s696 + $0xba0] sm:$0xff]
                  %947 = vst [vmem:[%s697 + $0x3e0] sm:$0xff] %v946
                  %v948 = vld [vmem:[%s696 + $0xbb8] sm:$0xff]
                  %949 = vst [vmem:[%s697 + $0x3e8] sm:$0xff] %v948
                  %v950 = vld [vmem:[%s696 + $0xbd0] sm:$0xff]
                  %951 = vst [vmem:[%s697 + $0x3f0] sm:$0xff] %v950
                  %v952 = vld [vmem:[%s696 + $0xbe8] sm:$0xff]
                  %953 = vst [vmem:[%s697 + $0x3f8] sm:$0xff] %v952
                  %v954 = vld [vmem:[%s696 + $0xc00] sm:$0xff]
                  %955 = vst [vmem:[%s697 + $0x400] sm:$0xff] %v954
                  %v956 = vld [vmem:[%s696 + $0xc18] sm:$0xff]
                  %957 = vst [vmem:[%s697 + $0x408] sm:$0xff] %v956
                  %v958 = vld [vmem:[%s696 + $0xc30] sm:$0xff]
                  %959 = vst [vmem:[%s697 + $0x410] sm:$0xff] %v958
                  %v960 = vld [vmem:[%s696 + $0xc48] sm:$0xff]
                  %961 = vst [vmem:[%s697 + $0x418] sm:$0xff] %v960
                  %v962 = vld [vmem:[%s696 + $0xc60] sm:$0xff]
                  %963 = vst [vmem:[%s697 + $0x420] sm:$0xff] %v962
                  %v964 = vld [vmem:[%s696 + $0xc78] sm:$0xff]
                  %965 = vst [vmem:[%s697 + $0x428] sm:$0xff] %v964
                  %v966 = vld [vmem:[%s696 + $0xc90] sm:$0xff]
                  %967 = vst [vmem:[%s697 + $0x430] sm:$0xff] %v966
                  %v968 = vld [vmem:[%s696 + $0xca8] sm:$0xff]
                  %969 = vst [vmem:[%s697 + $0x438] sm:$0xff] %v968
                  %v970 = vld [vmem:[%s696 + $0xcc0] sm:$0xff]
                  %971 = vst [vmem:[%s697 + $0x440] sm:$0xff] %v970
                  %v972 = vld [vmem:[%s696 + $0xcd8] sm:$0xff]
                  %973 = vst [vmem:[%s697 + $0x448] sm:$0xff] %v972
                  %v974 = vld [vmem:[%s696 + $0xcf0] sm:$0xff]
                  %975 = vst [vmem:[%s697 + $0x450] sm:$0xff] %v974
                  %v976 = vld [vmem:[%s696 + $0xd08] sm:$0xff]
                  %977 = vst [vmem:[%s697 + $0x458] sm:$0xff] %v976
                  %v978 = vld [vmem:[%s696 + $0xd20] sm:$0xff]
                  %979 = vst [vmem:[%s697 + $0x460] sm:$0xff] %v978
                  %v980 = vld [vmem:[%s696 + $0xd38] sm:$0xff]
                  %981 = vst [vmem:[%s697 + $0x468] sm:$0xff] %v980
                  %v982 = vld [vmem:[%s696 + $0xd50] sm:$0xff]
                  %983 = vst [vmem:[%s697 + $0x470] sm:$0xff] %v982
                  %v984 = vld [vmem:[%s696 + $0xd68] sm:$0xff]
                  %985 = vst [vmem:[%s697 + $0x478] sm:$0xff] %v984
                  %v986 = vld [vmem:[%s696 + $0xd80] sm:$0xff]
                  %987 = vst [vmem:[%s697 + $0x480] sm:$0xff] %v986
                  %v988 = vld [vmem:[%s696 + $0xd98] sm:$0xff]
                  %989 = vst [vmem:[%s697 + $0x488] sm:$0xff] %v988
                  %v990 = vld [vmem:[%s696 + $0xdb0] sm:$0xff]
                  %991 = vst [vmem:[%s697 + $0x490] sm:$0xff] %v990
                  %v992 = vld [vmem:[%s696 + $0xdc8] sm:$0xff]
                  %993 = vst [vmem:[%s697 + $0x498] sm:$0xff] %v992
                  %v994 = vld [vmem:[%s696 + $0xde0] sm:$0xff]
                  %995 = vst [vmem:[%s697 + $0x4a0] sm:$0xff] %v994
                  %v996 = vld [vmem:[%s696 + $0xdf8] sm:$0xff]
                  %997 = vst [vmem:[%s697 + $0x4a8] sm:$0xff] %v996
                  %v998 = vld [vmem:[%s696 + $0xe10] sm:$0xff]
                  %999 = vst [vmem:[%s697 + $0x4b0] sm:$0xff] %v998
                  %v1000 = vld [vmem:[%s696 + $0xe28] sm:$0xff]
                  %1001 = vst [vmem:[%s697 + $0x4b8] sm:$0xff] %v1000
                  %v1002 = vld [vmem:[%s696 + $0xe40] sm:$0xff]
                  %1003 = vst [vmem:[%s697 + $0x4c0] sm:$0xff] %v1002
                  %v1004 = vld [vmem:[%s696 + $0xe58] sm:$0xff]
                  %1005 = vst [vmem:[%s697 + $0x4c8] sm:$0xff] %v1004
                  %v1006 = vld [vmem:[%s696 + $0xe70] sm:$0xff]
                  %1007 = vst [vmem:[%s697 + $0x4d0] sm:$0xff] %v1006
                  %v1008 = vld [vmem:[%s696 + $0xe88] sm:$0xff]
                  %1009 = vst [vmem:[%s697 + $0x4d8] sm:$0xff] %v1008
                  %v1010 = vld [vmem:[%s696 + $0xea0] sm:$0xff]
                  %1011 = vst [vmem:[%s697 + $0x4e0] sm:$0xff] %v1010
                  %v1012 = vld [vmem:[%s696 + $0xeb8] sm:$0xff]
                  %1013 = vst [vmem:[%s697 + $0x4e8] sm:$0xff] %v1012
                  %v1014 = vld [vmem:[%s696 + $0xed0] sm:$0xff]
                  %1015 = vst [vmem:[%s697 + $0x4f0] sm:$0xff] %v1014
                  %v1016 = vld [vmem:[%s696 + $0xee8] sm:$0xff]
                  %1017 = vst [vmem:[%s697 + $0x4f8] sm:$0xff] %v1016
                  %v1018 = vld [vmem:[%s696 + $0xf00] sm:$0xff]
                  %1019 = vst [vmem:[%s697 + $0x500] sm:$0xff] %v1018
                  %v1020 = vld [vmem:[%s696 + $0xf18] sm:$0xff]
                  %1021 = vst [vmem:[%s697 + $0x508] sm:$0xff] %v1020
                  %v1022 = vld [vmem:[%s696 + $0xf30] sm:$0xff]
                  %1023 = vst [vmem:[%s697 + $0x510] sm:$0xff] %v1022
                  %v1024 = vld [vmem:[%s696 + $0xf48] sm:$0xff]
                  %1025 = vst [vmem:[%s697 + $0x518] sm:$0xff] %v1024
                  %v1026 = vld [vmem:[%s696 + $0xf60] sm:$0xff]
                  %1027 = vst [vmem:[%s697 + $0x520] sm:$0xff] %v1026
                  %v1028 = vld [vmem:[%s696 + $0xf78] sm:$0xff]
                  %1029 = vst [vmem:[%s697 + $0x528] sm:$0xff] %v1028
                  %v1030 = vld [vmem:[%s696 + $0xf90] sm:$0xff]
                  %1031 = vst [vmem:[%s697 + $0x530] sm:$0xff] %v1030
                  %v1032 = vld [vmem:[%s696 + $0xfa8] sm:$0xff]
                  %1033 = vst [vmem:[%s697 + $0x538] sm:$0xff] %v1032
                  %v1034 = vld [vmem:[%s696 + $0xfc0] sm:$0xff]
                  %1035 = vst [vmem:[%s697 + $0x540] sm:$0xff] %v1034
                  %v1036 = vld [vmem:[%s696 + $0xfd8] sm:$0xff]
                  %1037 = vst [vmem:[%s697 + $0x548] sm:$0xff] %v1036
                  %v1038 = vld [vmem:[%s696 + $0xff0] sm:$0xff]
                  %1039 = vst [vmem:[%s697 + $0x550] sm:$0xff] %v1038
                  %v1040 = vld [vmem:[%s696 + $0x1008] sm:$0xff]
                  %1041 = vst [vmem:[%s697 + $0x558] sm:$0xff] %v1040
                  %v1042 = vld [vmem:[%s696 + $0x1020] sm:$0xff]
                  %1043 = vst [vmem:[%s697 + $0x560] sm:$0xff] %v1042
                  %v1044 = vld [vmem:[%s696 + $0x1038] sm:$0xff]
                  %1045 = vst [vmem:[%s697 + $0x568] sm:$0xff] %v1044
                  %v1046 = vld [vmem:[%s696 + $0x1050] sm:$0xff]
                  %1047 = vst [vmem:[%s697 + $0x570] sm:$0xff] %v1046
                  %v1048 = vld [vmem:[%s696 + $0x1068] sm:$0xff]
                  %1049 = vst [vmem:[%s697 + $0x578] sm:$0xff] %v1048
                  %v1050 = vld [vmem:[%s696 + $0x1080] sm:$0xff]
                  %1051 = vst [vmem:[%s697 + $0x580] sm:$0xff] %v1050
                  %v1052 = vld [vmem:[%s696 + $0x1098] sm:$0xff]
                  %1053 = vst [vmem:[%s697 + $0x588] sm:$0xff] %v1052
                  %v1054 = vld [vmem:[%s696 + $0x10b0] sm:$0xff]
                  %1055 = vst [vmem:[%s697 + $0x590] sm:$0xff] %v1054
                  %v1056 = vld [vmem:[%s696 + $0x10c8] sm:$0xff]
                  %1057 = vst [vmem:[%s697 + $0x598] sm:$0xff] %v1056
                  %v1058 = vld [vmem:[%s696 + $0x10e0] sm:$0xff]
                  %1059 = vst [vmem:[%s697 + $0x5a0] sm:$0xff] %v1058
                  %v1060 = vld [vmem:[%s696 + $0x10f8] sm:$0xff]
                  %1061 = vst [vmem:[%s697 + $0x5a8] sm:$0xff] %v1060
                  %v1062 = vld [vmem:[%s696 + $0x1110] sm:$0xff]
                  %1063 = vst [vmem:[%s697 + $0x5b0] sm:$0xff] %v1062
                  %v1064 = vld [vmem:[%s696 + $0x1128] sm:$0xff]
                  %1065 = vst [vmem:[%s697 + $0x5b8] sm:$0xff] %v1064
                  %v1066 = vld [vmem:[%s696 + $0x1140] sm:$0xff]
                  %1067 = vst [vmem:[%s697 + $0x5c0] sm:$0xff] %v1066
                  %v1068 = vld [vmem:[%s696 + $0x1158] sm:$0xff]
                  %1069 = vst [vmem:[%s697 + $0x5c8] sm:$0xff] %v1068
                  %v1070 = vld [vmem:[%s696 + $0x1170] sm:$0xff]
                  %1071 = vst [vmem:[%s697 + $0x5d0] sm:$0xff] %v1070
                  %v1072 = vld [vmem:[%s696 + $0x1188] sm:$0xff]
                  %1073 = vst [vmem:[%s697 + $0x5d8] sm:$0xff] %v1072
                  %v1074 = vld [vmem:[%s696 + $0x11a0] sm:$0xff]
                  %1075 = vst [vmem:[%s697 + $0x5e0] sm:$0xff] %v1074
                  %v1076 = vld [vmem:[%s696 + $0x11b8] sm:$0xff]
                  %1077 = vst [vmem:[%s697 + $0x5e8] sm:$0xff] %v1076
                  %v1078 = vld [vmem:[%s696 + $0x11d0] sm:$0xff]
                  %1079 = vst [vmem:[%s697 + $0x5f0] sm:$0xff] %v1078
                  %v1080 = vld [vmem:[%s696 + $0x11e8] sm:$0xff]
                  %1081 = vst [vmem:[%s697 + $0x5f8] sm:$0xff] %v1080
                  %v1082 = vld [vmem:[%s696 + $0x1200] sm:$0xff]
                  %1083 = vst [vmem:[%s697 + $0x600] sm:$0xff] %v1082
                  %v1084 = vld [vmem:[%s696 + $0x1218] sm:$0xff]
                  %1085 = vst [vmem:[%s697 + $0x608] sm:$0xff] %v1084
                  %v1086 = vld [vmem:[%s696 + $0x1230] sm:$0xff]
                  %1087 = vst [vmem:[%s697 + $0x610] sm:$0xff] %v1086
                  %v1088 = vld [vmem:[%s696 + $0x1248] sm:$0xff]
                  %1089 = vst [vmem:[%s697 + $0x618] sm:$0xff] %v1088
                  %v1090 = vld [vmem:[%s696 + $0x1260] sm:$0xff]
                  %1091 = vst [vmem:[%s697 + $0x620] sm:$0xff] %v1090
                  %v1092 = vld [vmem:[%s696 + $0x1278] sm:$0xff]
                  %1093 = vst [vmem:[%s697 + $0x628] sm:$0xff] %v1092
                  %v1094 = vld [vmem:[%s696 + $0x1290] sm:$0xff]
                  %1095 = vst [vmem:[%s697 + $0x630] sm:$0xff] %v1094
                  %v1096 = vld [vmem:[%s696 + $0x12a8] sm:$0xff]
                  %1097 = vst [vmem:[%s697 + $0x638] sm:$0xff] %v1096
                  %v1098 = vld [vmem:[%s696 + $0x12c0] sm:$0xff]
                  %1099 = vst [vmem:[%s697 + $0x640] sm:$0xff] %v1098
                  %v1100 = vld [vmem:[%s696 + $0x12d8] sm:$0xff]
                  %1101 = vst [vmem:[%s697 + $0x648] sm:$0xff] %v1100
                  %v1102 = vld [vmem:[%s696 + $0x12f0] sm:$0xff]
                  %1103 = vst [vmem:[%s697 + $0x650] sm:$0xff] %v1102
                  %v1104 = vld [vmem:[%s696 + $0x1308] sm:$0xff]
                  %1105 = vst [vmem:[%s697 + $0x658] sm:$0xff] %v1104
                  %v1106 = vld [vmem:[%s696 + $0x1320] sm:$0xff]
                  %1107 = vst [vmem:[%s697 + $0x660] sm:$0xff] %v1106
                  %v1108 = vld [vmem:[%s696 + $0x1338] sm:$0xff]
                  %1109 = vst [vmem:[%s697 + $0x668] sm:$0xff] %v1108
                  %v1110 = vld [vmem:[%s696 + $0x1350] sm:$0xff]
                  %1111 = vst [vmem:[%s697 + $0x670] sm:$0xff] %v1110
                  %v1112 = vld [vmem:[%s696 + $0x1368] sm:$0xff]
                  %1113 = vst [vmem:[%s697 + $0x678] sm:$0xff] %v1112
                  %v1114 = vld [vmem:[%s696 + $0x1380] sm:$0xff]
                  %1115 = vst [vmem:[%s697 + $0x680] sm:$0xff] %v1114
                  %v1116 = vld [vmem:[%s696 + $0x1398] sm:$0xff]
                  %1117 = vst [vmem:[%s697 + $0x688] sm:$0xff] %v1116
                  %v1118 = vld [vmem:[%s696 + $0x13b0] sm:$0xff]
                  %1119 = vst [vmem:[%s697 + $0x690] sm:$0xff] %v1118
                  %v1120 = vld [vmem:[%s696 + $0x13c8] sm:$0xff]
                  %1121 = vst [vmem:[%s697 + $0x698] sm:$0xff] %v1120
                  %v1122 = vld [vmem:[%s696 + $0x13e0] sm:$0xff]
                  %1123 = vst [vmem:[%s697 + $0x6a0] sm:$0xff] %v1122
                  %v1124 = vld [vmem:[%s696 + $0x13f8] sm:$0xff]
                  %1125 = vst [vmem:[%s697 + $0x6a8] sm:$0xff] %v1124
                  %v1126 = vld [vmem:[%s696 + $0x1410] sm:$0xff]
                  %1127 = vst [vmem:[%s697 + $0x6b0] sm:$0xff] %v1126
                  %v1128 = vld [vmem:[%s696 + $0x1428] sm:$0xff]
                  %1129 = vst [vmem:[%s697 + $0x6b8] sm:$0xff] %v1128
                  %v1130 = vld [vmem:[%s696 + $0x1440] sm:$0xff]
                  %1131 = vst [vmem:[%s697 + $0x6c0] sm:$0xff] %v1130
                  %v1132 = vld [vmem:[%s696 + $0x1458] sm:$0xff]
                  %1133 = vst [vmem:[%s697 + $0x6c8] sm:$0xff] %v1132
                  %v1134 = vld [vmem:[%s696 + $0x1470] sm:$0xff]
                  %1135 = vst [vmem:[%s697 + $0x6d0] sm:$0xff] %v1134
                  %v1136 = vld [vmem:[%s696 + $0x1488] sm:$0xff]
                  %1137 = vst [vmem:[%s697 + $0x6d8] sm:$0xff] %v1136
                  %v1138 = vld [vmem:[%s696 + $0x14a0] sm:$0xff]
                  %1139 = vst [vmem:[%s697 + $0x6e0] sm:$0xff] %v1138
                  %v1140 = vld [vmem:[%s696 + $0x14b8] sm:$0xff]
                  %1141 = vst [vmem:[%s697 + $0x6e8] sm:$0xff] %v1140
                  %v1142 = vld [vmem:[%s696 + $0x14d0] sm:$0xff]
                  %1143 = vst [vmem:[%s697 + $0x6f0] sm:$0xff] %v1142
                  %v1144 = vld [vmem:[%s696 + $0x14e8] sm:$0xff]
                  %1145 = vst [vmem:[%s697 + $0x6f8] sm:$0xff] %v1144
                  %v1146 = vld [vmem:[%s696 + $0x1500] sm:$0xff]
                  %1147 = vst [vmem:[%s697 + $0x700] sm:$0xff] %v1146
                  %v1148 = vld [vmem:[%s696 + $0x1518] sm:$0xff]
                  %1149 = vst [vmem:[%s697 + $0x708] sm:$0xff] %v1148
                  %v1150 = vld [vmem:[%s696 + $0x1530] sm:$0xff]
                  %1151 = vst [vmem:[%s697 + $0x710] sm:$0xff] %v1150
                  %v1152 = vld [vmem:[%s696 + $0x1548] sm:$0xff]
                  %1153 = vst [vmem:[%s697 + $0x718] sm:$0xff] %v1152
                  %v1154 = vld [vmem:[%s696 + $0x1560] sm:$0xff]
                  %1155 = vst [vmem:[%s697 + $0x720] sm:$0xff] %v1154
                  %v1156 = vld [vmem:[%s696 + $0x1578] sm:$0xff]
                  %1157 = vst [vmem:[%s697 + $0x728] sm:$0xff] %v1156
                  %v1158 = vld [vmem:[%s696 + $0x1590] sm:$0xff]
                  %1159 = vst [vmem:[%s697 + $0x730] sm:$0xff] %v1158
                  %v1160 = vld [vmem:[%s696 + $0x15a8] sm:$0xff]
                  %1161 = vst [vmem:[%s697 + $0x738] sm:$0xff] %v1160
                  %v1162 = vld [vmem:[%s696 + $0x15c0] sm:$0xff]
                  %1163 = vst [vmem:[%s697 + $0x740] sm:$0xff] %v1162
                  %v1164 = vld [vmem:[%s696 + $0x15d8] sm:$0xff]
                  %1165 = vst [vmem:[%s697 + $0x748] sm:$0xff] %v1164
                  %v1166 = vld [vmem:[%s696 + $0x15f0] sm:$0xff]
                  %1167 = vst [vmem:[%s697 + $0x750] sm:$0xff] %v1166
                  %v1168 = vld [vmem:[%s696 + $0x1608] sm:$0xff]
                  %1169 = vst [vmem:[%s697 + $0x758] sm:$0xff] %v1168
                  %v1170 = vld [vmem:[%s696 + $0x1620] sm:$0xff]
                  %1171 = vst [vmem:[%s697 + $0x760] sm:$0xff] %v1170
                  %v1172 = vld [vmem:[%s696 + $0x1638] sm:$0xff]
                  %1173 = vst [vmem:[%s697 + $0x768] sm:$0xff] %v1172
                  %v1174 = vld [vmem:[%s696 + $0x1650] sm:$0xff]
                  %1175 = vst [vmem:[%s697 + $0x770] sm:$0xff] %v1174
                  %v1176 = vld [vmem:[%s696 + $0x1668] sm:$0xff]
                  %1177 = vst [vmem:[%s697 + $0x778] sm:$0xff] %v1176
                $region52: #{metanet_forward.1} parent=46 // loop_footer
                  %s695 = sadd.s32 1, %s691
                $region53: #{metanet_forward.1} parent=46 // loop_footer_branch
                  %690 = sbr.rel target = $region49
                $region54: #{metanet_forward.1} parent=46 // loop_exit
                  _
              $region47: #{metanet_forward.1} parent=31 // pred_fallthru
                _
              // Predicated region
              $region55: #{metanet_forward.1} parent=31 // pred_check
                _
              $region56: #{metanet_forward.1} parent=31 // pred_check_branch
                %1179 = sbr.rel target = $region58
              $region57: #{metanet_forward.1} parent=31 // pred_region
                _
              $region58: #{metanet_forward.1} parent=31 // pred_fallthru
                _
            $region32: #{metanet_forward.1} parent=27 // pred_fallthru
              _
            // Predicated region
            $region33: #{metanet_forward.1} parent=27 // pred_check
              _
            $region34: #{metanet_forward.1} parent=27 // pred_check_branch
              %198 = sbr.rel target = $region36
            $region35: #{metanet_forward.1} parent=27 // pred_region
              loop: start=0, step=1, limit=1
              $region37: #{metanet_forward.1} parent=35 // loop_pre_header
                _
              $region38: #{metanet_forward.1} parent=35 // loop_header
                %s201 = sphi 0, %s205
                %p202 = scmp.ge.s32.totalorder %s201, 1
                %s206 = sphi %s192, %s192
                %s207 = sphi %s190, %s190
              $region39: #{metanet_forward.1} parent=35 // loop_header_branch
                %204 = sbr.rel (%p202) target = $region43
              $region40: #{metanet_forward.1} parent=35 // loop_body
                %v208 = vld [vmem:[%s206] sm:$0xff]
                %209 = vst [vmem:[%s207] sm:$0xff] %v208
                %v210 = vld [vmem:[%s206 + $0x18] sm:$0xff]
                %211 = vst [vmem:[%s207 + $0x8] sm:$0xff] %v210
                %v212 = vld [vmem:[%s206 + $0x30] sm:$0xff]
                %213 = vst [vmem:[%s207 + $0x10] sm:$0xff] %v212
                %v214 = vld [vmem:[%s206 + $0x48] sm:$0xff]
                %215 = vst [vmem:[%s207 + $0x18] sm:$0xff] %v214
                %v216 = vld [vmem:[%s206 + $0x60] sm:$0xff]
                %217 = vst [vmem:[%s207 + $0x20] sm:$0xff] %v216
                %v218 = vld [vmem:[%s206 + $0x78] sm:$0xff]
                %219 = vst [vmem:[%s207 + $0x28] sm:$0xff] %v218
                %v220 = vld [vmem:[%s206 + $0x90] sm:$0xff]
                %221 = vst [vmem:[%s207 + $0x30] sm:$0xff] %v220
                %v222 = vld [vmem:[%s206 + $0xa8] sm:$0xff]
                %223 = vst [vmem:[%s207 + $0x38] sm:$0xff] %v222
                %v224 = vld [vmem:[%s206 + $0xc0] sm:$0xff]
                %225 = vst [vmem:[%s207 + $0x40] sm:$0xff] %v224
                %v226 = vld [vmem:[%s206 + $0xd8] sm:$0xff]
                %227 = vst [vmem:[%s207 + $0x48] sm:$0xff] %v226
                %v228 = vld [vmem:[%s206 + $0xf0] sm:$0xff]
                %229 = vst [vmem:[%s207 + $0x50] sm:$0xff] %v228
                %v230 = vld [vmem:[%s206 + $0x108] sm:$0xff]
                %231 = vst [vmem:[%s207 + $0x58] sm:$0xff] %v230
                %v232 = vld [vmem:[%s206 + $0x120] sm:$0xff]
                %233 = vst [vmem:[%s207 + $0x60] sm:$0xff] %v232
                %v234 = vld [vmem:[%s206 + $0x138] sm:$0xff]
                %235 = vst [vmem:[%s207 + $0x68] sm:$0xff] %v234
                %v236 = vld [vmem:[%s206 + $0x150] sm:$0xff]
                %237 = vst [vmem:[%s207 + $0x70] sm:$0xff] %v236
                %v238 = vld [vmem:[%s206 + $0x168] sm:$0xff]
                %239 = vst [vmem:[%s207 + $0x78] sm:$0xff] %v238
                %v240 = vld [vmem:[%s206 + $0x180] sm:$0xff]
                %241 = vst [vmem:[%s207 + $0x80] sm:$0xff] %v240
                %v242 = vld [vmem:[%s206 + $0x198] sm:$0xff]
                %243 = vst [vmem:[%s207 + $0x88] sm:$0xff] %v242
                %v244 = vld [vmem:[%s206 + $0x1b0] sm:$0xff]
                %245 = vst [vmem:[%s207 + $0x90] sm:$0xff] %v244
                %v246 = vld [vmem:[%s206 + $0x1c8] sm:$0xff]
                %247 = vst [vmem:[%s207 + $0x98] sm:$0xff] %v246
                %v248 = vld [vmem:[%s206 + $0x1e0] sm:$0xff]
                %249 = vst [vmem:[%s207 + $0xa0] sm:$0xff] %v248
                %v250 = vld [vmem:[%s206 + $0x1f8] sm:$0xff]
                %251 = vst [vmem:[%s207 + $0xa8] sm:$0xff] %v250
                %v252 = vld [vmem:[%s206 + $0x210] sm:$0xff]
                %253 = vst [vmem:[%s207 + $0xb0] sm:$0xff] %v252
                %v254 = vld [vmem:[%s206 + $0x228] sm:$0xff]
                %255 = vst [vmem:[%s207 + $0xb8] sm:$0xff] %v254
                %v256 = vld [vmem:[%s206 + $0x240] sm:$0xff]
                %257 = vst [vmem:[%s207 + $0xc0] sm:$0xff] %v256
                %v258 = vld [vmem:[%s206 + $0x258] sm:$0xff]
                %259 = vst [vmem:[%s207 + $0xc8] sm:$0xff] %v258
                %v260 = vld [vmem:[%s206 + $0x270] sm:$0xff]
                %261 = vst [vmem:[%s207 + $0xd0] sm:$0xff] %v260
                %v262 = vld [vmem:[%s206 + $0x288] sm:$0xff]
                %263 = vst [vmem:[%s207 + $0xd8] sm:$0xff] %v262
                %v264 = vld [vmem:[%s206 + $0x2a0] sm:$0xff]
                %265 = vst [vmem:[%s207 + $0xe0] sm:$0xff] %v264
                %v266 = vld [vmem:[%s206 + $0x2b8] sm:$0xff]
                %267 = vst [vmem:[%s207 + $0xe8] sm:$0xff] %v266
                %v268 = vld [vmem:[%s206 + $0x2d0] sm:$0xff]
                %269 = vst [vmem:[%s207 + $0xf0] sm:$0xff] %v268
                %v270 = vld [vmem:[%s206 + $0x2e8] sm:$0xff]
                %271 = vst [vmem:[%s207 + $0xf8] sm:$0xff] %v270
                %v272 = vld [vmem:[%s206 + $0x300] sm:$0xff]
                %273 = vst [vmem:[%s207 + $0x100] sm:$0xff] %v272
                %v274 = vld [vmem:[%s206 + $0x318] sm:$0xff]
                %275 = vst [vmem:[%s207 + $0x108] sm:$0xff] %v274
                %v276 = vld [vmem:[%s206 + $0x330] sm:$0xff]
                %277 = vst [vmem:[%s207 + $0x110] sm:$0xff] %v276
                %v278 = vld [vmem:[%s206 + $0x348] sm:$0xff]
                %279 = vst [vmem:[%s207 + $0x118] sm:$0xff] %v278
                %v280 = vld [vmem:[%s206 + $0x360] sm:$0xff]
                %281 = vst [vmem:[%s207 + $0x120] sm:$0xff] %v280
                %v282 = vld [vmem:[%s206 + $0x378] sm:$0xff]
                %283 = vst [vmem:[%s207 + $0x128] sm:$0xff] %v282
                %v284 = vld [vmem:[%s206 + $0x390] sm:$0xff]
                %285 = vst [vmem:[%s207 + $0x130] sm:$0xff] %v284
                %v286 = vld [vmem:[%s206 + $0x3a8] sm:$0xff]
                %287 = vst [vmem:[%s207 + $0x138] sm:$0xff] %v286
                %v288 = vld [vmem:[%s206 + $0x3c0] sm:$0xff]
                %289 = vst [vmem:[%s207 + $0x140] sm:$0xff] %v288
                %v290 = vld [vmem:[%s206 + $0x3d8] sm:$0xff]
                %291 = vst [vmem:[%s207 + $0x148] sm:$0xff] %v290
                %v292 = vld [vmem:[%s206 + $0x3f0] sm:$0xff]
                %293 = vst [vmem:[%s207 + $0x150] sm:$0xff] %v292
                %v294 = vld [vmem:[%s206 + $0x408] sm:$0xff]
                %295 = vst [vmem:[%s207 + $0x158] sm:$0xff] %v294
                %v296 = vld [vmem:[%s206 + $0x420] sm:$0xff]
                %297 = vst [vmem:[%s207 + $0x160] sm:$0xff] %v296
                %v298 = vld [vmem:[%s206 + $0x438] sm:$0xff]
                %299 = vst [vmem:[%s207 + $0x168] sm:$0xff] %v298
                %v300 = vld [vmem:[%s206 + $0x450] sm:$0xff]
                %301 = vst [vmem:[%s207 + $0x170] sm:$0xff] %v300
                %v302 = vld [vmem:[%s206 + $0x468] sm:$0xff]
                %303 = vst [vmem:[%s207 + $0x178] sm:$0xff] %v302
                %v304 = vld [vmem:[%s206 + $0x480] sm:$0xff]
                %305 = vst [vmem:[%s207 + $0x180] sm:$0xff] %v304
                %v306 = vld [vmem:[%s206 + $0x498] sm:$0xff]
                %307 = vst [vmem:[%s207 + $0x188] sm:$0xff] %v306
                %v308 = vld [vmem:[%s206 + $0x4b0] sm:$0xff]
                %309 = vst [vmem:[%s207 + $0x190] sm:$0xff] %v308
                %v310 = vld [vmem:[%s206 + $0x4c8] sm:$0xff]
                %311 = vst [vmem:[%s207 + $0x198] sm:$0xff] %v310
                %v312 = vld [vmem:[%s206 + $0x4e0] sm:$0xff]
                %313 = vst [vmem:[%s207 + $0x1a0] sm:$0xff] %v312
                %v314 = vld [vmem:[%s206 + $0x4f8] sm:$0xff]
                %315 = vst [vmem:[%s207 + $0x1a8] sm:$0xff] %v314
                %v316 = vld [vmem:[%s206 + $0x510] sm:$0xff]
                %317 = vst [vmem:[%s207 + $0x1b0] sm:$0xff] %v316
                %v318 = vld [vmem:[%s206 + $0x528] sm:$0xff]
                %319 = vst [vmem:[%s207 + $0x1b8] sm:$0xff] %v318
                %v320 = vld [vmem:[%s206 + $0x540] sm:$0xff]
                %321 = vst [vmem:[%s207 + $0x1c0] sm:$0xff] %v320
                %v322 = vld [vmem:[%s206 + $0x558] sm:$0xff]
                %323 = vst [vmem:[%s207 + $0x1c8] sm:$0xff] %v322
                %v324 = vld [vmem:[%s206 + $0x570] sm:$0xff]
                %325 = vst [vmem:[%s207 + $0x1d0] sm:$0xff] %v324
                %v326 = vld [vmem:[%s206 + $0x588] sm:$0xff]
                %327 = vst [vmem:[%s207 + $0x1d8] sm:$0xff] %v326
                %v328 = vld [vmem:[%s206 + $0x5a0] sm:$0xff]
                %329 = vst [vmem:[%s207 + $0x1e0] sm:$0xff] %v328
                %v330 = vld [vmem:[%s206 + $0x5b8] sm:$0xff]
                %331 = vst [vmem:[%s207 + $0x1e8] sm:$0xff] %v330
                %v332 = vld [vmem:[%s206 + $0x5d0] sm:$0xff]
                %333 = vst [vmem:[%s207 + $0x1f0] sm:$0xff] %v332
                %v334 = vld [vmem:[%s206 + $0x5e8] sm:$0xff]
                %335 = vst [vmem:[%s207 + $0x1f8] sm:$0xff] %v334
                %v336 = vld [vmem:[%s206 + $0x600] sm:$0xff]
                %337 = vst [vmem:[%s207 + $0x200] sm:$0xff] %v336
                %v338 = vld [vmem:[%s206 + $0x618] sm:$0xff]
                %339 = vst [vmem:[%s207 + $0x208] sm:$0xff] %v338
                %v340 = vld [vmem:[%s206 + $0x630] sm:$0xff]
                %341 = vst [vmem:[%s207 + $0x210] sm:$0xff] %v340
                %v342 = vld [vmem:[%s206 + $0x648] sm:$0xff]
                %343 = vst [vmem:[%s207 + $0x218] sm:$0xff] %v342
                %v344 = vld [vmem:[%s206 + $0x660] sm:$0xff]
                %345 = vst [vmem:[%s207 + $0x220] sm:$0xff] %v344
                %v346 = vld [vmem:[%s206 + $0x678] sm:$0xff]
                %347 = vst [vmem:[%s207 + $0x228] sm:$0xff] %v346
                %v348 = vld [vmem:[%s206 + $0x690] sm:$0xff]
                %349 = vst [vmem:[%s207 + $0x230] sm:$0xff] %v348
                %v350 = vld [vmem:[%s206 + $0x6a8] sm:$0xff]
                %351 = vst [vmem:[%s207 + $0x238] sm:$0xff] %v350
                %v352 = vld [vmem:[%s206 + $0x6c0] sm:$0xff]
                %353 = vst [vmem:[%s207 + $0x240] sm:$0xff] %v352
                %v354 = vld [vmem:[%s206 + $0x6d8] sm:$0xff]
                %355 = vst [vmem:[%s207 + $0x248] sm:$0xff] %v354
                %v356 = vld [vmem:[%s206 + $0x6f0] sm:$0xff]
                %357 = vst [vmem:[%s207 + $0x250] sm:$0xff] %v356
                %v358 = vld [vmem:[%s206 + $0x708] sm:$0xff]
                %359 = vst [vmem:[%s207 + $0x258] sm:$0xff] %v358
                %v360 = vld [vmem:[%s206 + $0x720] sm:$0xff]
                %361 = vst [vmem:[%s207 + $0x260] sm:$0xff] %v360
                %v362 = vld [vmem:[%s206 + $0x738] sm:$0xff]
                %363 = vst [vmem:[%s207 + $0x268] sm:$0xff] %v362
                %v364 = vld [vmem:[%s206 + $0x750] sm:$0xff]
                %365 = vst [vmem:[%s207 + $0x270] sm:$0xff] %v364
                %v366 = vld [vmem:[%s206 + $0x768] sm:$0xff]
                %367 = vst [vmem:[%s207 + $0x278] sm:$0xff] %v366
                %v368 = vld [vmem:[%s206 + $0x780] sm:$0xff]
                %369 = vst [vmem:[%s207 + $0x280] sm:$0xff] %v368
                %v370 = vld [vmem:[%s206 + $0x798] sm:$0xff]
                %371 = vst [vmem:[%s207 + $0x288] sm:$0xff] %v370
                %v372 = vld [vmem:[%s206 + $0x7b0] sm:$0xff]
                %373 = vst [vmem:[%s207 + $0x290] sm:$0xff] %v372
                %v374 = vld [vmem:[%s206 + $0x7c8] sm:$0xff]
                %375 = vst [vmem:[%s207 + $0x298] sm:$0xff] %v374
                %v376 = vld [vmem:[%s206 + $0x7e0] sm:$0xff]
                %377 = vst [vmem:[%s207 + $0x2a0] sm:$0xff] %v376
                %v378 = vld [vmem:[%s206 + $0x7f8] sm:$0xff]
                %379 = vst [vmem:[%s207 + $0x2a8] sm:$0xff] %v378
                %v380 = vld [vmem:[%s206 + $0x810] sm:$0xff]
                %381 = vst [vmem:[%s207 + $0x2b0] sm:$0xff] %v380
                %v382 = vld [vmem:[%s206 + $0x828] sm:$0xff]
                %383 = vst [vmem:[%s207 + $0x2b8] sm:$0xff] %v382
                %v384 = vld [vmem:[%s206 + $0x840] sm:$0xff]
                %385 = vst [vmem:[%s207 + $0x2c0] sm:$0xff] %v384
                %v386 = vld [vmem:[%s206 + $0x858] sm:$0xff]
                %387 = vst [vmem:[%s207 + $0x2c8] sm:$0xff] %v386
                %v388 = vld [vmem:[%s206 + $0x870] sm:$0xff]
                %389 = vst [vmem:[%s207 + $0x2d0] sm:$0xff] %v388
                %v390 = vld [vmem:[%s206 + $0x888] sm:$0xff]
                %391 = vst [vmem:[%s207 + $0x2d8] sm:$0xff] %v390
                %v392 = vld [vmem:[%s206 + $0x8a0] sm:$0xff]
                %393 = vst [vmem:[%s207 + $0x2e0] sm:$0xff] %v392
                %v394 = vld [vmem:[%s206 + $0x8b8] sm:$0xff]
                %395 = vst [vmem:[%s207 + $0x2e8] sm:$0xff] %v394
                %v396 = vld [vmem:[%s206 + $0x8d0] sm:$0xff]
                %397 = vst [vmem:[%s207 + $0x2f0] sm:$0xff] %v396
                %v398 = vld [vmem:[%s206 + $0x8e8] sm:$0xff]
                %399 = vst [vmem:[%s207 + $0x2f8] sm:$0xff] %v398
                %v400 = vld [vmem:[%s206 + $0x900] sm:$0xff]
                %401 = vst [vmem:[%s207 + $0x300] sm:$0xff] %v400
                %v402 = vld [vmem:[%s206 + $0x918] sm:$0xff]
                %403 = vst [vmem:[%s207 + $0x308] sm:$0xff] %v402
                %v404 = vld [vmem:[%s206 + $0x930] sm:$0xff]
                %405 = vst [vmem:[%s207 + $0x310] sm:$0xff] %v404
                %v406 = vld [vmem:[%s206 + $0x948] sm:$0xff]
                %407 = vst [vmem:[%s207 + $0x318] sm:$0xff] %v406
                %v408 = vld [vmem:[%s206 + $0x960] sm:$0xff]
                %409 = vst [vmem:[%s207 + $0x320] sm:$0xff] %v408
                %v410 = vld [vmem:[%s206 + $0x978] sm:$0xff]
                %411 = vst [vmem:[%s207 + $0x328] sm:$0xff] %v410
                %v412 = vld [vmem:[%s206 + $0x990] sm:$0xff]
                %413 = vst [vmem:[%s207 + $0x330] sm:$0xff] %v412
                %v414 = vld [vmem:[%s206 + $0x9a8] sm:$0xff]
                %415 = vst [vmem:[%s207 + $0x338] sm:$0xff] %v414
                %v416 = vld [vmem:[%s206 + $0x9c0] sm:$0xff]
                %417 = vst [vmem:[%s207 + $0x340] sm:$0xff] %v416
                %v418 = vld [vmem:[%s206 + $0x9d8] sm:$0xff]
                %419 = vst [vmem:[%s207 + $0x348] sm:$0xff] %v418
                %v420 = vld [vmem:[%s206 + $0x9f0] sm:$0xff]
                %421 = vst [vmem:[%s207 + $0x350] sm:$0xff] %v420
                %v422 = vld [vmem:[%s206 + $0xa08] sm:$0xff]
                %423 = vst [vmem:[%s207 + $0x358] sm:$0xff] %v422
                %v424 = vld [vmem:[%s206 + $0xa20] sm:$0xff]
                %425 = vst [vmem:[%s207 + $0x360] sm:$0xff] %v424
                %v426 = vld [vmem:[%s206 + $0xa38] sm:$0xff]
                %427 = vst [vmem:[%s207 + $0x368] sm:$0xff] %v426
                %v428 = vld [vmem:[%s206 + $0xa50] sm:$0xff]
                %429 = vst [vmem:[%s207 + $0x370] sm:$0xff] %v428
                %v430 = vld [vmem:[%s206 + $0xa68] sm:$0xff]
                %431 = vst [vmem:[%s207 + $0x378] sm:$0xff] %v430
                %v432 = vld [vmem:[%s206 + $0xa80] sm:$0xff]
                %433 = vst [vmem:[%s207 + $0x380] sm:$0xff] %v432
                %v434 = vld [vmem:[%s206 + $0xa98] sm:$0xff]
                %435 = vst [vmem:[%s207 + $0x388] sm:$0xff] %v434
                %v436 = vld [vmem:[%s206 + $0xab0] sm:$0xff]
                %437 = vst [vmem:[%s207 + $0x390] sm:$0xff] %v436
                %v438 = vld [vmem:[%s206 + $0xac8] sm:$0xff]
                %439 = vst [vmem:[%s207 + $0x398] sm:$0xff] %v438
                %v440 = vld [vmem:[%s206 + $0xae0] sm:$0xff]
                %441 = vst [vmem:[%s207 + $0x3a0] sm:$0xff] %v440
                %v442 = vld [vmem:[%s206 + $0xaf8] sm:$0xff]
                %443 = vst [vmem:[%s207 + $0x3a8] sm:$0xff] %v442
                %v444 = vld [vmem:[%s206 + $0xb10] sm:$0xff]
                %445 = vst [vmem:[%s207 + $0x3b0] sm:$0xff] %v444
                %v446 = vld [vmem:[%s206 + $0xb28] sm:$0xff]
                %447 = vst [vmem:[%s207 + $0x3b8] sm:$0xff] %v446
                %v448 = vld [vmem:[%s206 + $0xb40] sm:$0xff]
                %449 = vst [vmem:[%s207 + $0x3c0] sm:$0xff] %v448
                %v450 = vld [vmem:[%s206 + $0xb58] sm:$0xff]
                %451 = vst [vmem:[%s207 + $0x3c8] sm:$0xff] %v450
                %v452 = vld [vmem:[%s206 + $0xb70] sm:$0xff]
                %453 = vst [vmem:[%s207 + $0x3d0] sm:$0xff] %v452
                %v454 = vld [vmem:[%s206 + $0xb88] sm:$0xff]
                %455 = vst [vmem:[%s207 + $0x3d8] sm:$0xff] %v454
                %v456 = vld [vmem:[%s206 + $0xba0] sm:$0xff]
                %457 = vst [vmem:[%s207 + $0x3e0] sm:$0xff] %v456
                %v458 = vld [vmem:[%s206 + $0xbb8] sm:$0xff]
                %459 = vst [vmem:[%s207 + $0x3e8] sm:$0xff] %v458
                %v460 = vld [vmem:[%s206 + $0xbd0] sm:$0xff]
                %461 = vst [vmem:[%s207 + $0x3f0] sm:$0xff] %v460
                %v462 = vld [vmem:[%s206 + $0xbe8] sm:$0xff]
                %463 = vst [vmem:[%s207 + $0x3f8] sm:$0xff] %v462
                %v464 = vld [vmem:[%s206 + $0xc00] sm:$0xff]
                %465 = vst [vmem:[%s207 + $0x400] sm:$0xff] %v464
                %v466 = vld [vmem:[%s206 + $0xc18] sm:$0xff]
                %467 = vst [vmem:[%s207 + $0x408] sm:$0xff] %v466
                %v468 = vld [vmem:[%s206 + $0xc30] sm:$0xff]
                %469 = vst [vmem:[%s207 + $0x410] sm:$0xff] %v468
                %v470 = vld [vmem:[%s206 + $0xc48] sm:$0xff]
                %471 = vst [vmem:[%s207 + $0x418] sm:$0xff] %v470
                %v472 = vld [vmem:[%s206 + $0xc60] sm:$0xff]
                %473 = vst [vmem:[%s207 + $0x420] sm:$0xff] %v472
                %v474 = vld [vmem:[%s206 + $0xc78] sm:$0xff]
                %475 = vst [vmem:[%s207 + $0x428] sm:$0xff] %v474
                %v476 = vld [vmem:[%s206 + $0xc90] sm:$0xff]
                %477 = vst [vmem:[%s207 + $0x430] sm:$0xff] %v476
                %v478 = vld [vmem:[%s206 + $0xca8] sm:$0xff]
                %479 = vst [vmem:[%s207 + $0x438] sm:$0xff] %v478
                %v480 = vld [vmem:[%s206 + $0xcc0] sm:$0xff]
                %481 = vst [vmem:[%s207 + $0x440] sm:$0xff] %v480
                %v482 = vld [vmem:[%s206 + $0xcd8] sm:$0xff]
                %483 = vst [vmem:[%s207 + $0x448] sm:$0xff] %v482
                %v484 = vld [vmem:[%s206 + $0xcf0] sm:$0xff]
                %485 = vst [vmem:[%s207 + $0x450] sm:$0xff] %v484
                %v486 = vld [vmem:[%s206 + $0xd08] sm:$0xff]
                %487 = vst [vmem:[%s207 + $0x458] sm:$0xff] %v486
                %v488 = vld [vmem:[%s206 + $0xd20] sm:$0xff]
                %489 = vst [vmem:[%s207 + $0x460] sm:$0xff] %v488
                %v490 = vld [vmem:[%s206 + $0xd38] sm:$0xff]
                %491 = vst [vmem:[%s207 + $0x468] sm:$0xff] %v490
                %v492 = vld [vmem:[%s206 + $0xd50] sm:$0xff]
                %493 = vst [vmem:[%s207 + $0x470] sm:$0xff] %v492
                %v494 = vld [vmem:[%s206 + $0xd68] sm:$0xff]
                %495 = vst [vmem:[%s207 + $0x478] sm:$0xff] %v494
                %v496 = vld [vmem:[%s206 + $0xd80] sm:$0xff]
                %497 = vst [vmem:[%s207 + $0x480] sm:$0xff] %v496
                %v498 = vld [vmem:[%s206 + $0xd98] sm:$0xff]
                %499 = vst [vmem:[%s207 + $0x488] sm:$0xff] %v498
                %v500 = vld [vmem:[%s206 + $0xdb0] sm:$0xff]
                %501 = vst [vmem:[%s207 + $0x490] sm:$0xff] %v500
                %v502 = vld [vmem:[%s206 + $0xdc8] sm:$0xff]
                %503 = vst [vmem:[%s207 + $0x498] sm:$0xff] %v502
                %v504 = vld [vmem:[%s206 + $0xde0] sm:$0xff]
                %505 = vst [vmem:[%s207 + $0x4a0] sm:$0xff] %v504
                %v506 = vld [vmem:[%s206 + $0xdf8] sm:$0xff]
                %507 = vst [vmem:[%s207 + $0x4a8] sm:$0xff] %v506
                %v508 = vld [vmem:[%s206 + $0xe10] sm:$0xff]
                %509 = vst [vmem:[%s207 + $0x4b0] sm:$0xff] %v508
                %v510 = vld [vmem:[%s206 + $0xe28] sm:$0xff]
                %511 = vst [vmem:[%s207 + $0x4b8] sm:$0xff] %v510
                %v512 = vld [vmem:[%s206 + $0xe40] sm:$0xff]
                %513 = vst [vmem:[%s207 + $0x4c0] sm:$0xff] %v512
                %v514 = vld [vmem:[%s206 + $0xe58] sm:$0xff]
                %515 = vst [vmem:[%s207 + $0x4c8] sm:$0xff] %v514
                %v516 = vld [vmem:[%s206 + $0xe70] sm:$0xff]
                %517 = vst [vmem:[%s207 + $0x4d0] sm:$0xff] %v516
                %v518 = vld [vmem:[%s206 + $0xe88] sm:$0xff]
                %519 = vst [vmem:[%s207 + $0x4d8] sm:$0xff] %v518
                %v520 = vld [vmem:[%s206 + $0xea0] sm:$0xff]
                %521 = vst [vmem:[%s207 + $0x4e0] sm:$0xff] %v520
                %v522 = vld [vmem:[%s206 + $0xeb8] sm:$0xff]
                %523 = vst [vmem:[%s207 + $0x4e8] sm:$0xff] %v522
                %v524 = vld [vmem:[%s206 + $0xed0] sm:$0xff]
                %525 = vst [vmem:[%s207 + $0x4f0] sm:$0xff] %v524
                %v526 = vld [vmem:[%s206 + $0xee8] sm:$0xff]
                %527 = vst [vmem:[%s207 + $0x4f8] sm:$0xff] %v526
                %v528 = vld [vmem:[%s206 + $0xf00] sm:$0xff]
                %529 = vst [vmem:[%s207 + $0x500] sm:$0xff] %v528
                %v530 = vld [vmem:[%s206 + $0xf18] sm:$0xff]
                %531 = vst [vmem:[%s207 + $0x508] sm:$0xff] %v530
                %v532 = vld [vmem:[%s206 + $0xf30] sm:$0xff]
                %533 = vst [vmem:[%s207 + $0x510] sm:$0xff] %v532
                %v534 = vld [vmem:[%s206 + $0xf48] sm:$0xff]
                %535 = vst [vmem:[%s207 + $0x518] sm:$0xff] %v534
                %v536 = vld [vmem:[%s206 + $0xf60] sm:$0xff]
                %537 = vst [vmem:[%s207 + $0x520] sm:$0xff] %v536
                %v538 = vld [vmem:[%s206 + $0xf78] sm:$0xff]
                %539 = vst [vmem:[%s207 + $0x528] sm:$0xff] %v538
                %v540 = vld [vmem:[%s206 + $0xf90] sm:$0xff]
                %541 = vst [vmem:[%s207 + $0x530] sm:$0xff] %v540
                %v542 = vld [vmem:[%s206 + $0xfa8] sm:$0xff]
                %543 = vst [vmem:[%s207 + $0x538] sm:$0xff] %v542
                %v544 = vld [vmem:[%s206 + $0xfc0] sm:$0xff]
                %545 = vst [vmem:[%s207 + $0x540] sm:$0xff] %v544
                %v546 = vld [vmem:[%s206 + $0xfd8] sm:$0xff]
                %547 = vst [vmem:[%s207 + $0x548] sm:$0xff] %v546
                %v548 = vld [vmem:[%s206 + $0xff0] sm:$0xff]
                %549 = vst [vmem:[%s207 + $0x550] sm:$0xff] %v548
                %v550 = vld [vmem:[%s206 + $0x1008] sm:$0xff]
                %551 = vst [vmem:[%s207 + $0x558] sm:$0xff] %v550
                %v552 = vld [vmem:[%s206 + $0x1020] sm:$0xff]
                %553 = vst [vmem:[%s207 + $0x560] sm:$0xff] %v552
                %v554 = vld [vmem:[%s206 + $0x1038] sm:$0xff]
                %555 = vst [vmem:[%s207 + $0x568] sm:$0xff] %v554
                %v556 = vld [vmem:[%s206 + $0x1050] sm:$0xff]
                %557 = vst [vmem:[%s207 + $0x570] sm:$0xff] %v556
                %v558 = vld [vmem:[%s206 + $0x1068] sm:$0xff]
                %559 = vst [vmem:[%s207 + $0x578] sm:$0xff] %v558
                %v560 = vld [vmem:[%s206 + $0x1080] sm:$0xff]
                %561 = vst [vmem:[%s207 + $0x580] sm:$0xff] %v560
                %v562 = vld [vmem:[%s206 + $0x1098] sm:$0xff]
                %563 = vst [vmem:[%s207 + $0x588] sm:$0xff] %v562
                %v564 = vld [vmem:[%s206 + $0x10b0] sm:$0xff]
                %565 = vst [vmem:[%s207 + $0x590] sm:$0xff] %v564
                %v566 = vld [vmem:[%s206 + $0x10c8] sm:$0xff]
                %567 = vst [vmem:[%s207 + $0x598] sm:$0xff] %v566
                %v568 = vld [vmem:[%s206 + $0x10e0] sm:$0xff]
                %569 = vst [vmem:[%s207 + $0x5a0] sm:$0xff] %v568
                %v570 = vld [vmem:[%s206 + $0x10f8] sm:$0xff]
                %571 = vst [vmem:[%s207 + $0x5a8] sm:$0xff] %v570
                %v572 = vld [vmem:[%s206 + $0x1110] sm:$0xff]
                %573 = vst [vmem:[%s207 + $0x5b0] sm:$0xff] %v572
                %v574 = vld [vmem:[%s206 + $0x1128] sm:$0xff]
                %575 = vst [vmem:[%s207 + $0x5b8] sm:$0xff] %v574
                %v576 = vld [vmem:[%s206 + $0x1140] sm:$0xff]
                %577 = vst [vmem:[%s207 + $0x5c0] sm:$0xff] %v576
                %v578 = vld [vmem:[%s206 + $0x1158] sm:$0xff]
                %579 = vst [vmem:[%s207 + $0x5c8] sm:$0xff] %v578
                %v580 = vld [vmem:[%s206 + $0x1170] sm:$0xff]
                %581 = vst [vmem:[%s207 + $0x5d0] sm:$0xff] %v580
                %v582 = vld [vmem:[%s206 + $0x1188] sm:$0xff]
                %583 = vst [vmem:[%s207 + $0x5d8] sm:$0xff] %v582
                %v584 = vld [vmem:[%s206 + $0x11a0] sm:$0xff]
                %585 = vst [vmem:[%s207 + $0x5e0] sm:$0xff] %v584
                %v586 = vld [vmem:[%s206 + $0x11b8] sm:$0xff]
                %587 = vst [vmem:[%s207 + $0x5e8] sm:$0xff] %v586
                %v588 = vld [vmem:[%s206 + $0x11d0] sm:$0xff]
                %589 = vst [vmem:[%s207 + $0x5f0] sm:$0xff] %v588
                %v590 = vld [vmem:[%s206 + $0x11e8] sm:$0xff]
                %591 = vst [vmem:[%s207 + $0x5f8] sm:$0xff] %v590
                %v592 = vld [vmem:[%s206 + $0x1200] sm:$0xff]
                %593 = vst [vmem:[%s207 + $0x600] sm:$0xff] %v592
                %v594 = vld [vmem:[%s206 + $0x1218] sm:$0xff]
                %595 = vst [vmem:[%s207 + $0x608] sm:$0xff] %v594
                %v596 = vld [vmem:[%s206 + $0x1230] sm:$0xff]
                %597 = vst [vmem:[%s207 + $0x610] sm:$0xff] %v596
                %v598 = vld [vmem:[%s206 + $0x1248] sm:$0xff]
                %599 = vst [vmem:[%s207 + $0x618] sm:$0xff] %v598
                %v600 = vld [vmem:[%s206 + $0x1260] sm:$0xff]
                %601 = vst [vmem:[%s207 + $0x620] sm:$0xff] %v600
                %v602 = vld [vmem:[%s206 + $0x1278] sm:$0xff]
                %603 = vst [vmem:[%s207 + $0x628] sm:$0xff] %v602
                %v604 = vld [vmem:[%s206 + $0x1290] sm:$0xff]
                %605 = vst [vmem:[%s207 + $0x630] sm:$0xff] %v604
                %v606 = vld [vmem:[%s206 + $0x12a8] sm:$0xff]
                %607 = vst [vmem:[%s207 + $0x638] sm:$0xff] %v606
                %v608 = vld [vmem:[%s206 + $0x12c0] sm:$0xff]
                %609 = vst [vmem:[%s207 + $0x640] sm:$0xff] %v608
                %v610 = vld [vmem:[%s206 + $0x12d8] sm:$0xff]
                %611 = vst [vmem:[%s207 + $0x648] sm:$0xff] %v610
                %v612 = vld [vmem:[%s206 + $0x12f0] sm:$0xff]
                %613 = vst [vmem:[%s207 + $0x650] sm:$0xff] %v612
                %v614 = vld [vmem:[%s206 + $0x1308] sm:$0xff]
                %615 = vst [vmem:[%s207 + $0x658] sm:$0xff] %v614
                %v616 = vld [vmem:[%s206 + $0x1320] sm:$0xff]
                %617 = vst [vmem:[%s207 + $0x660] sm:$0xff] %v616
                %v618 = vld [vmem:[%s206 + $0x1338] sm:$0xff]
                %619 = vst [vmem:[%s207 + $0x668] sm:$0xff] %v618
                %v620 = vld [vmem:[%s206 + $0x1350] sm:$0xff]
                %621 = vst [vmem:[%s207 + $0x670] sm:$0xff] %v620
                %v622 = vld [vmem:[%s206 + $0x1368] sm:$0xff]
                %623 = vst [vmem:[%s207 + $0x678] sm:$0xff] %v622
                %v624 = vld [vmem:[%s206 + $0x1380] sm:$0xff]
                %625 = vst [vmem:[%s207 + $0x680] sm:$0xff] %v624
                %v626 = vld [vmem:[%s206 + $0x1398] sm:$0xff]
                %627 = vst [vmem:[%s207 + $0x688] sm:$0xff] %v626
                %v628 = vld [vmem:[%s206 + $0x13b0] sm:$0xff]
                %629 = vst [vmem:[%s207 + $0x690] sm:$0xff] %v628
                %v630 = vld [vmem:[%s206 + $0x13c8] sm:$0xff]
                %631 = vst [vmem:[%s207 + $0x698] sm:$0xff] %v630
                %v632 = vld [vmem:[%s206 + $0x13e0] sm:$0xff]
                %633 = vst [vmem:[%s207 + $0x6a0] sm:$0xff] %v632
                %v634 = vld [vmem:[%s206 + $0x13f8] sm:$0xff]
                %635 = vst [vmem:[%s207 + $0x6a8] sm:$0xff] %v634
                %v636 = vld [vmem:[%s206 + $0x1410] sm:$0xff]
                %637 = vst [vmem:[%s207 + $0x6b0] sm:$0xff] %v636
                %v638 = vld [vmem:[%s206 + $0x1428] sm:$0xff]
                %639 = vst [vmem:[%s207 + $0x6b8] sm:$0xff] %v638
                %v640 = vld [vmem:[%s206 + $0x1440] sm:$0xff]
                %641 = vst [vmem:[%s207 + $0x6c0] sm:$0xff] %v640
                %v642 = vld [vmem:[%s206 + $0x1458] sm:$0xff]
                %643 = vst [vmem:[%s207 + $0x6c8] sm:$0xff] %v642
                %v644 = vld [vmem:[%s206 + $0x1470] sm:$0xff]
                %645 = vst [vmem:[%s207 + $0x6d0] sm:$0xff] %v644
                %v646 = vld [vmem:[%s206 + $0x1488] sm:$0xff]
                %647 = vst [vmem:[%s207 + $0x6d8] sm:$0xff] %v646
                %v648 = vld [vmem:[%s206 + $0x14a0] sm:$0xff]
                %649 = vst [vmem:[%s207 + $0x6e0] sm:$0xff] %v648
                %v650 = vld [vmem:[%s206 + $0x14b8] sm:$0xff]
                %651 = vst [vmem:[%s207 + $0x6e8] sm:$0xff] %v650
                %v652 = vld [vmem:[%s206 + $0x14d0] sm:$0xff]
                %653 = vst [vmem:[%s207 + $0x6f0] sm:$0xff] %v652
                %v654 = vld [vmem:[%s206 + $0x14e8] sm:$0xff]
                %655 = vst [vmem:[%s207 + $0x6f8] sm:$0xff] %v654
                %v656 = vld [vmem:[%s206 + $0x1500] sm:$0xff]
                %657 = vst [vmem:[%s207 + $0x700] sm:$0xff] %v656
                %v658 = vld [vmem:[%s206 + $0x1518] sm:$0xff]
                %659 = vst [vmem:[%s207 + $0x708] sm:$0xff] %v658
                %v660 = vld [vmem:[%s206 + $0x1530] sm:$0xff]
                %661 = vst [vmem:[%s207 + $0x710] sm:$0xff] %v660
                %v662 = vld [vmem:[%s206 + $0x1548] sm:$0xff]
                %663 = vst [vmem:[%s207 + $0x718] sm:$0xff] %v662
                %v664 = vld [vmem:[%s206 + $0x1560] sm:$0xff]
                %665 = vst [vmem:[%s207 + $0x720] sm:$0xff] %v664
                %v666 = vld [vmem:[%s206 + $0x1578] sm:$0xff]
                %667 = vst [vmem:[%s207 + $0x728] sm:$0xff] %v666
                %v668 = vld [vmem:[%s206 + $0x1590] sm:$0xff]
                %669 = vst [vmem:[%s207 + $0x730] sm:$0xff] %v668
                %v670 = vld [vmem:[%s206 + $0x15a8] sm:$0xff]
                %671 = vst [vmem:[%s207 + $0x738] sm:$0xff] %v670
                %v672 = vld [vmem:[%s206 + $0x15c0] sm:$0xff]
                %673 = vst [vmem:[%s207 + $0x740] sm:$0xff] %v672
                %v674 = vld [vmem:[%s206 + $0x15d8] sm:$0xff]
                %675 = vst [vmem:[%s207 + $0x748] sm:$0xff] %v674
                %v676 = vld [vmem:[%s206 + $0x15f0] sm:$0xff]
                %677 = vst [vmem:[%s207 + $0x750] sm:$0xff] %v676
                %v678 = vld [vmem:[%s206 + $0x1608] sm:$0xff]
                %679 = vst [vmem:[%s207 + $0x758] sm:$0xff] %v678
                %v680 = vld [vmem:[%s206 + $0x1620] sm:$0xff]
                %681 = vst [vmem:[%s207 + $0x760] sm:$0xff] %v680
                %v682 = vld [vmem:[%s206 + $0x1638] sm:$0xff]
                %683 = vst [vmem:[%s207 + $0x768] sm:$0xff] %v682
                %v684 = vld [vmem:[%s206 + $0x1650] sm:$0xff]
                %685 = vst [vmem:[%s207 + $0x770] sm:$0xff] %v684
                %v686 = vld [vmem:[%s206 + $0x1668] sm:$0xff]
                %687 = vst [vmem:[%s207 + $0x778] sm:$0xff] %v686
              $region41: #{metanet_forward.1} parent=35 // loop_footer
                %s205 = sadd.s32 1, %s201
              $region42: #{metanet_forward.1} parent=35 // loop_footer_branch
                %200 = sbr.rel target = $region38
              $region43: #{metanet_forward.1} parent=35 // loop_exit
                _
            $region36: #{metanet_forward.1} parent=27 // pred_fallthru
              _
          $region28: #{metanet_forward.1} parent=23 // pred_fallthru
            _
          %1180 = vnop
        $region24: #{metanet_forward.1} parent=19 // pred_fallthru
          _
        // Predicated region
        $region59: #{metanet_forward.1} parent=19 // pred_check
          %p1181 = pneg %p78
        $region60: #{metanet_forward.1} parent=19 // pred_check_branch
          %1183 = sbr.rel (%p1181) target = $region62
        $region61: #{metanet_forward.1} parent=19 // pred_region
          %p1184 = scmp.lt.s32.totalorder %s11, 2
          %s1185 = scalar_select %p1184, %s11, 2
          %s1186 = scalar_lea.vmem %s2, %s1185
        $region62: #{metanet_forward.1} parent=19 // pred_fallthru
          _
        // Predicated region
        $region63: #{metanet_forward.1} parent=19 // pred_check
          %p1187 = pneg %p104
        $region64: #{metanet_forward.1} parent=19 // pred_check_branch
          %1189 = sbr.rel (%p1187) target = $region66
        $region65: #{metanet_forward.1} parent=19 // pred_region
          %p1190 = scmp.lt.s32.totalorder %s11, 2
          %s1191 = scalar_select %p1190, %s11, 2
          %s1192 = smul.addr %s1191, 16
          %s1193 = smul.addr %s1192, 8
          %s1194 = scalar_lea.vmem %s3, %s1193
        $region66: #{metanet_forward.1} parent=19 // pred_fallthru
          _
        // Predicated region
        $region67: #{metanet_forward.1} parent=19 // pred_check
          %p1195 = pneg %p130
        $region68: #{metanet_forward.1} parent=19 // pred_check_branch
          %1197 = sbr.rel (%p1195) target = $region70
        $region69: #{metanet_forward.1} parent=19 // pred_region
          %p1198 = scmp.lt.s32.totalorder %s11, 2
          %s1199 = scalar_select %p1198, %s11, 2
          %s1200 = scalar_lea.vmem %s4, %s1199
        $region70: #{metanet_forward.1} parent=19 // pred_fallthru
          _
      $region20: #{metanet_forward.1} parent=5 // pred_fallthru
        _
      %p1201 = scmp.le.s32.totalorder 1, %s11
      %p1202 = scmp.lt.s32.totalorder %s11, 4
      %p1203 = pnand %p1201, %p1202
      %p1204 = pneg %p1203
      // Predicated region
      $region71: #{metanet_forward.1} parent=5 // pred_check
        _
      $region72: #{metanet_forward.1} parent=5 // pred_check_branch
        %1206 = sbr.rel (%p1203) target = $region74
      $region73: #{metanet_forward.1} parent=5 // pred_region
        %s1207 = ssub.s32 %s11, 1
        %s1208 = sand.u32 %s45, 1
        %s1209 = sand.u32 %s45, 1
        %s1210 = smul.addr %s1209, 1920
        %s1211 = scalar_lea.vmem [#allocation2], %s1210
        // Predicated region
        $region75: #{metanet_forward.1} parent=73 // pred_check
          %p1212 = pneg %p58
        $region76: #{metanet_forward.1} parent=73 // pred_check_branch
          %1214 = sbr.rel (%p1212) target = $region78
        $region77: #{metanet_forward.1} parent=73 // pred_region
          _
        $region78: #{metanet_forward.1} parent=73 // pred_fallthru
          _
        %p1215 = pneg %p32
        %p1216 = pneg %p29
        %s1217 = sand.u32 %s45, 1
        %s1218 = sand.u32 %s45, 1
        %s1219 = smul.addr %s1218, 1920
        %s1220 = scalar_lea.vmem [#allocation2], %s1219
        %p1221 = pneg %p58
        %p1222 = pneg %p55
        %p1223 = scmp.lt.s32.totalorder %s16, 2
        %s1224 = scalar_select %p1223, %s16, 2
        %s1225 = scalar_lea.vmem %s2, %s1224
        %p1226 = pneg %p84
        %p1227 = pneg %p81
        %p1228 = scmp.lt.s32.totalorder %s16, 2
        %s1229 = scalar_select %p1228, %s16, 2
        %s1230 = smul.addr %s1229, 16
        %s1231 = smul.addr %s1230, 8
        %s1232 = scalar_lea.vmem %s3, %s1231
        %p1233 = pneg %p110
        %p1234 = pneg %p107
        %p1235 = scmp.lt.s32.totalorder %s16, 2
        %s1236 = scalar_select %p1235, %s16, 2
        %s1237 = scalar_lea.vmem %s4, %s1236
        %p1238 = pneg %p136
        %p1239 = pneg %p133
        %p1240 = pneg %p162
        %p1241 = pneg %p159
        %p1242 = scmp.lt.s32.totalorder %s16, 2
        %s1243 = scalar_select %p1242, %s16, 2
        %s1244 = smul.addr %s1243, 8
        %s1245 = scalar_lea.vmem %s5, %s1244
        %p1246 = scmp.lt.s32.totalorder %s16, 2
        %s1247 = scalar_select %p1246, %s16, 2
        %s1248 = scalar_lea.vmem %s2, %s1247
        %p1249 = scmp.lt.s32.totalorder %s16, 2
        %s1250 = scalar_select %p1249, %s16, 2
        %s1251 = smul.addr %s1250, 16
        %s1252 = smul.addr %s1251, 8
        %s1253 = scalar_lea.vmem %s3, %s1252
        %p1254 = scmp.lt.s32.totalorder %s16, 2
        %s1255 = scalar_select %p1254, %s16, 2
        %s1256 = scalar_lea.vmem %s4, %s1255
        %p1257 = scmp.lt.s32.totalorder %s16, 2
        %s1258 = scalar_select %p1257, %s16, 2
        %s1259 = smul.addr %s1258, 8
        %s1260 = scalar_lea.vmem %s5, %s1259
        %v1261 = vld [vmem:[%s0] sm:$0xff]
        %v1262 = vld [vmem:[%s0 + $0x8] sm:$0xff]
        %v1263 = vld [vmem:[%s0 + $0x10] sm:$0xff]
        %v1264 = vld [vmem:[%s0 + $0x18] sm:$0xff]
        %v1265 = vld [vmem:[%s0 + $0x20] sm:$0xff]
        %v1266 = vld [vmem:[%s0 + $0x28] sm:$0xff]
        %v1267 = vld [vmem:[%s0 + $0x30] sm:$0xff]
        %v1268 = vld [vmem:[%s0 + $0x38] sm:$0xff]
        %v1269 = vld [vmem:[%s0 + $0x40] sm:$0xff]
        %v1270 = vld [vmem:[%s0 + $0x48] sm:$0xff]
        %v1271 = vld [vmem:[%s0 + $0x50] sm:$0xff]
        %v1272 = vld [vmem:[%s0 + $0x58] sm:$0xff]
        %v1273 = vld [vmem:[%s0 + $0x60] sm:$0xff]
        %v1274 = vld [vmem:[%s0 + $0x68] sm:$0xff]
        %v1275 = vld [vmem:[%s0 + $0x70] sm:$0xff]
        %v1276 = vld [vmem:[%s1211] sm:$0xff]
        %v1277 = vld [vmem:[%s1211 + $0x8] sm:$0xff]
        %v1278 = vld [vmem:[%s1211 + $0x10] sm:$0xff]
        %v1279 = vld [vmem:[%s1211 + $0x18] sm:$0xff]
        %v1280 = vld [vmem:[%s1211 + $0x20] sm:$0xff]
        %v1281 = vld [vmem:[%s1211 + $0x28] sm:$0xff]
        %v1282 = vld [vmem:[%s1211 + $0x30] sm:$0xff]
        %v1283 = vld [vmem:[%s1211 + $0x38] sm:$0xff]
        %v1284 = vld [vmem:[%s1211 + $0x40] sm:$0xff]
        %v1285 = vld [vmem:[%s1211 + $0x48] sm:$0xff]
        %v1286 = vld [vmem:[%s1211 + $0x50] sm:$0xff]
        %v1287 = vld [vmem:[%s1211 + $0x58] sm:$0xff]
        %v1288 = vld [vmem:[%s1211 + $0x60] sm:$0xff]
        %v1289 = vld [vmem:[%s1211 + $0x68] sm:$0xff]
        %v1290 = vld [vmem:[%s1211 + $0x70] sm:$0xff]
        %v1291 = vld [vmem:[%s1211 + $0x78] sm:$0xff]
        %v1292 = vld [vmem:[%s1211 + $0x80] sm:$0xff]
        %v1293 = vld [vmem:[%s1211 + $0x88] sm:$0xff]
        %v1294 = vld [vmem:[%s1211 + $0x90] sm:$0xff]
        %v1295 = vld [vmem:[%s1211 + $0x98] sm:$0xff]
        %v1296 = vld [vmem:[%s1211 + $0xa0] sm:$0xff]
        %v1297 = vld [vmem:[%s1211 + $0xa8] sm:$0xff]
        %v1298 = vld [vmem:[%s1211 + $0xb0] sm:$0xff]
        %v1299 = vld [vmem:[%s1211 + $0xb8] sm:$0xff]
        %v1300 = vld [vmem:[%s1211 + $0xc0] sm:$0xff]
        %v1301 = vld [vmem:[%s1211 + $0xc8] sm:$0xff]
        %v1302 = vld [vmem:[%s1211 + $0xd0] sm:$0xff]
        %v1303 = vld [vmem:[%s1211 + $0xd8] sm:$0xff]
        %v1304 = vld [vmem:[%s1211 + $0xe0] sm:$0xff]
        %v1305 = vld [vmem:[%s1211 + $0xe8] sm:$0xff]
        %v1306 = vld [vmem:[%s1211 + $0xf0] sm:$0xff]
        %v1307 = vld [vmem:[%s1211 + $0xf8] sm:$0xff]
        %v1308 = vld [vmem:[%s1211 + $0x100] sm:$0xff]
        %v1309 = vld [vmem:[%s1211 + $0x108] sm:$0xff]
        %v1310 = vld [vmem:[%s1211 + $0x110] sm:$0xff]
        %v1311 = vld [vmem:[%s1211 + $0x118] sm:$0xff]
        %v1312 = vld [vmem:[%s1211 + $0x120] sm:$0xff]
        %v1313 = vld [vmem:[%s1211 + $0x128] sm:$0xff]
        %v1314 = vld [vmem:[%s1211 + $0x130] sm:$0xff]
        %v1315 = vld [vmem:[%s1211 + $0x138] sm:$0xff]
        %v1316 = vld [vmem:[%s1211 + $0x140] sm:$0xff]
        %v1317 = vld [vmem:[%s1211 + $0x148] sm:$0xff]
        %v1318 = vld [vmem:[%s1211 + $0x150] sm:$0xff]
        %v1319 = vld [vmem:[%s1211 + $0x158] sm:$0xff]
        %v1320 = vld [vmem:[%s1211 + $0x160] sm:$0xff]
        %v1321 = vld [vmem:[%s1211 + $0x168] sm:$0xff]
        %v1322 = vld [vmem:[%s1211 + $0x170] sm:$0xff]
        %v1323 = vld [vmem:[%s1211 + $0x178] sm:$0xff]
        %v1324 = vld [vmem:[%s1211 + $0x180] sm:$0xff]
        %v1325 = vld [vmem:[%s1211 + $0x188] sm:$0xff]
        %v1326 = vld [vmem:[%s1211 + $0x190] sm:$0xff]
        %v1327 = vld [vmem:[%s1211 + $0x198] sm:$0xff]
        %v1328 = vld [vmem:[%s1211 + $0x1a0] sm:$0xff]
        %v1329 = vld [vmem:[%s1211 + $0x1a8] sm:$0xff]
        %v1330 = vld [vmem:[%s1211 + $0x1b0] sm:$0xff]
        %v1331 = vld [vmem:[%s1211 + $0x1b8] sm:$0xff]
        %v1332 = vld [vmem:[%s1211 + $0x1c0] sm:$0xff]
        %v1333 = vld [vmem:[%s1211 + $0x1c8] sm:$0xff]
        %v1334 = vld [vmem:[%s1211 + $0x1d0] sm:$0xff]
        %v1335 = vld [vmem:[%s1211 + $0x1d8] sm:$0xff]
        %v1336 = vld [vmem:[%s1211 + $0x1e0] sm:$0xff]
        %v1337 = vld [vmem:[%s1211 + $0x1e8] sm:$0xff]
        %v1338 = vld [vmem:[%s1211 + $0x1f0] sm:$0xff]
        %v1339 = vld [vmem:[%s1211 + $0x1f8] sm:$0xff]
        %v1340 = vld [vmem:[%s1211 + $0x200] sm:$0xff]
        %v1341 = vld [vmem:[%s1211 + $0x208] sm:$0xff]
        %v1342 = vld [vmem:[%s1211 + $0x210] sm:$0xff]
        %v1343 = vld [vmem:[%s1211 + $0x218] sm:$0xff]
        %v1344 = vld [vmem:[%s1211 + $0x220] sm:$0xff]
        %v1345 = vld [vmem:[%s1211 + $0x228] sm:$0xff]
        %v1346 = vld [vmem:[%s1211 + $0x230] sm:$0xff]
        %v1347 = vld [vmem:[%s1211 + $0x238] sm:$0xff]
        %v1348 = vld [vmem:[%s1211 + $0x240] sm:$0xff]
        %v1349 = vld [vmem:[%s1211 + $0x248] sm:$0xff]
        %v1350 = vld [vmem:[%s1211 + $0x250] sm:$0xff]
        %v1351 = vld [vmem:[%s1211 + $0x258] sm:$0xff]
        %v1352 = vld [vmem:[%s1211 + $0x260] sm:$0xff]
        %v1353 = vld [vmem:[%s1211 + $0x268] sm:$0xff]
        %v1354 = vld [vmem:[%s1211 + $0x270] sm:$0xff]
        %v1355 = vld [vmem:[%s1211 + $0x278] sm:$0xff]
        %v1356 = vld [vmem:[%s1211 + $0x280] sm:$0xff]
        %v1357 = vld [vmem:[%s1211 + $0x288] sm:$0xff]
        %v1358 = vld [vmem:[%s1211 + $0x290] sm:$0xff]
        %v1359 = vld [vmem:[%s1211 + $0x298] sm:$0xff]
        %v1360 = vld [vmem:[%s1211 + $0x2a0] sm:$0xff]
        %v1361 = vld [vmem:[%s1211 + $0x2a8] sm:$0xff]
        %v1362 = vld [vmem:[%s1211 + $0x2b0] sm:$0xff]
        %v1363 = vld [vmem:[%s1211 + $0x2b8] sm:$0xff]
        %v1364 = vld [vmem:[%s1211 + $0x2c0] sm:$0xff]
        %v1365 = vld [vmem:[%s1211 + $0x2c8] sm:$0xff]
        %v1366 = vld [vmem:[%s1211 + $0x2d0] sm:$0xff]
        %v1367 = vld [vmem:[%s1211 + $0x2d8] sm:$0xff]
        %v1368 = vld [vmem:[%s1211 + $0x2e0] sm:$0xff]
        %v1369 = vld [vmem:[%s1211 + $0x2e8] sm:$0xff]
        %v1370 = vld [vmem:[%s1211 + $0x2f0] sm:$0xff]
        %v1371 = vld [vmem:[%s1211 + $0x2f8] sm:$0xff]
        %v1372 = vld [vmem:[%s1211 + $0x300] sm:$0xff]
        %v1373 = vld [vmem:[%s1211 + $0x308] sm:$0xff]
        %v1374 = vld [vmem:[%s1211 + $0x310] sm:$0xff]
        %v1375 = vld [vmem:[%s1211 + $0x318] sm:$0xff]
        %v1376 = vld [vmem:[%s1211 + $0x320] sm:$0xff]
        %v1377 = vld [vmem:[%s1211 + $0x328] sm:$0xff]
        %v1378 = vld [vmem:[%s1211 + $0x330] sm:$0xff]
        %v1379 = vld [vmem:[%s1211 + $0x338] sm:$0xff]
        %v1380 = vld [vmem:[%s1211 + $0x340] sm:$0xff]
        %v1381 = vld [vmem:[%s1211 + $0x348] sm:$0xff]
        %v1382 = vld [vmem:[%s1211 + $0x350] sm:$0xff]
        %v1383 = vld [vmem:[%s1211 + $0x358] sm:$0xff]
        %v1384 = vld [vmem:[%s1211 + $0x360] sm:$0xff]
        %v1385 = vld [vmem:[%s1211 + $0x368] sm:$0xff]
        %v1386 = vld [vmem:[%s1211 + $0x370] sm:$0xff]
        %v1387 = vld [vmem:[%s1211 + $0x378] sm:$0xff]
        %v1388 = vld [vmem:[%s1211 + $0x380] sm:$0xff]
        %v1389 = vld [vmem:[%s1211 + $0x388] sm:$0xff]
        %v1390 = vld [vmem:[%s1211 + $0x390] sm:$0xff]
        %v1391 = vld [vmem:[%s1211 + $0x398] sm:$0xff]
        %v1392 = vld [vmem:[%s1211 + $0x3a0] sm:$0xff]
        %v1393 = vld [vmem:[%s1211 + $0x3a8] sm:$0xff]
        %v1394 = vld [vmem:[%s1211 + $0x3b0] sm:$0xff]
        %v1395 = vld [vmem:[%s1211 + $0x3b8] sm:$0xff]
        %v1396 = vld [vmem:[%s1211 + $0x3c0] sm:$0xff]
        %v1397 = vld [vmem:[%s1211 + $0x3c8] sm:$0xff]
        %v1398 = vld [vmem:[%s1211 + $0x3d0] sm:$0xff]
        %v1399 = vld [vmem:[%s1211 + $0x3d8] sm:$0xff]
        %v1400 = vld [vmem:[%s1211 + $0x3e0] sm:$0xff]
        %v1401 = vld [vmem:[%s1211 + $0x3e8] sm:$0xff]
        %v1402 = vld [vmem:[%s1211 + $0x3f0] sm:$0xff]
        %v1403 = vld [vmem:[%s1211 + $0x3f8] sm:$0xff]
        %v1404 = vld [vmem:[%s1211 + $0x400] sm:$0xff]
        %v1405 = vld [vmem:[%s1211 + $0x408] sm:$0xff]
        %v1406 = vld [vmem:[%s1211 + $0x410] sm:$0xff]
        %v1407 = vld [vmem:[%s1211 + $0x418] sm:$0xff]
        %v1408 = vld [vmem:[%s1211 + $0x420] sm:$0xff]
        %v1409 = vld [vmem:[%s1211 + $0x428] sm:$0xff]
        %v1410 = vld [vmem:[%s1211 + $0x430] sm:$0xff]
        %v1411 = vld [vmem:[%s1211 + $0x438] sm:$0xff]
        %v1412 = vld [vmem:[%s1211 + $0x440] sm:$0xff]
        %v1413 = vld [vmem:[%s1211 + $0x448] sm:$0xff]
        %v1414 = vld [vmem:[%s1211 + $0x450] sm:$0xff]
        %v1415 = vld [vmem:[%s1211 + $0x458] sm:$0xff]
        %v1416 = vld [vmem:[%s1211 + $0x460] sm:$0xff]
        %v1417 = vld [vmem:[%s1211 + $0x468] sm:$0xff]
        %v1418 = vld [vmem:[%s1211 + $0x470] sm:$0xff]
        %v1419 = vld [vmem:[%s1211 + $0x478] sm:$0xff]
        %v1420 = vld [vmem:[%s1211 + $0x480] sm:$0xff]
        %v1421 = vld [vmem:[%s1211 + $0x488] sm:$0xff]
        %v1422 = vld [vmem:[%s1211 + $0x490] sm:$0xff]
        %v1423 = vld [vmem:[%s1211 + $0x498] sm:$0xff]
        %v1424 = vld [vmem:[%s1211 + $0x4a0] sm:$0xff]
        %v1425 = vld [vmem:[%s1211 + $0x4a8] sm:$0xff]
        %v1426 = vld [vmem:[%s1211 + $0x4b0] sm:$0xff]
        %v1427 = vld [vmem:[%s1211 + $0x4b8] sm:$0xff]
        %v1428 = vld [vmem:[%s1211 + $0x4c0] sm:$0xff]
        %v1429 = vld [vmem:[%s1211 + $0x4c8] sm:$0xff]
        %v1430 = vld [vmem:[%s1211 + $0x4d0] sm:$0xff]
        %v1431 = vld [vmem:[%s1211 + $0x4d8] sm:$0xff]
        %v1432 = vld [vmem:[%s1211 + $0x4e0] sm:$0xff]
        %v1433 = vld [vmem:[%s1211 + $0x4e8] sm:$0xff]
        %v1434 = vld [vmem:[%s1211 + $0x4f0] sm:$0xff]
        %v1435 = vld [vmem:[%s1211 + $0x4f8] sm:$0xff]
        %v1436 = vld [vmem:[%s1211 + $0x500] sm:$0xff]
        %v1437 = vld [vmem:[%s1211 + $0x508] sm:$0xff]
        %v1438 = vld [vmem:[%s1211 + $0x510] sm:$0xff]
        %v1439 = vld [vmem:[%s1211 + $0x518] sm:$0xff]
        %v1440 = vld [vmem:[%s1211 + $0x520] sm:$0xff]
        %v1441 = vld [vmem:[%s1211 + $0x528] sm:$0xff]
        %v1442 = vld [vmem:[%s1211 + $0x530] sm:$0xff]
        %v1443 = vld [vmem:[%s1211 + $0x538] sm:$0xff]
        %v1444 = vld [vmem:[%s1211 + $0x540] sm:$0xff]
        %v1445 = vld [vmem:[%s1211 + $0x548] sm:$0xff]
        %v1446 = vld [vmem:[%s1211 + $0x550] sm:$0xff]
        %v1447 = vld [vmem:[%s1211 + $0x558] sm:$0xff]
        %v1448 = vld [vmem:[%s1211 + $0x560] sm:$0xff]
        %v1449 = vld [vmem:[%s1211 + $0x568] sm:$0xff]
        %v1450 = vld [vmem:[%s1211 + $0x570] sm:$0xff]
        %v1451 = vld [vmem:[%s1211 + $0x578] sm:$0xff]
        %v1452 = vld [vmem:[%s1211 + $0x580] sm:$0xff]
        %v1453 = vld [vmem:[%s1211 + $0x588] sm:$0xff]
        %v1454 = vld [vmem:[%s1211 + $0x590] sm:$0xff]
        %v1455 = vld [vmem:[%s1211 + $0x598] sm:$0xff]
        %v1456 = vld [vmem:[%s1211 + $0x5a0] sm:$0xff]
        %v1457 = vld [vmem:[%s1211 + $0x5a8] sm:$0xff]
        %v1458 = vld [vmem:[%s1211 + $0x5b0] sm:$0xff]
        %v1459 = vld [vmem:[%s1211 + $0x5b8] sm:$0xff]
        %v1460 = vld [vmem:[%s1211 + $0x5c0] sm:$0xff]
        %v1461 = vld [vmem:[%s1211 + $0x5c8] sm:$0xff]
        %v1462 = vld [vmem:[%s1211 + $0x5d0] sm:$0xff]
        %v1463 = vld [vmem:[%s1211 + $0x5d8] sm:$0xff]
        %v1464 = vld [vmem:[%s1211 + $0x5e0] sm:$0xff]
        %v1465 = vld [vmem:[%s1211 + $0x5e8] sm:$0xff]
        %v1466 = vld [vmem:[%s1211 + $0x5f0] sm:$0xff]
        %v1467 = vld [vmem:[%s1211 + $0x5f8] sm:$0xff]
        %v1468 = vld [vmem:[%s1211 + $0x600] sm:$0xff]
        %v1469 = vld [vmem:[%s1211 + $0x608] sm:$0xff]
        %v1470 = vld [vmem:[%s1211 + $0x610] sm:$0xff]
        %v1471 = vld [vmem:[%s1211 + $0x618] sm:$0xff]
        %v1472 = vld [vmem:[%s1211 + $0x620] sm:$0xff]
        %v1473 = vld [vmem:[%s1211 + $0x628] sm:$0xff]
        %v1474 = vld [vmem:[%s1211 + $0x630] sm:$0xff]
        %v1475 = vld [vmem:[%s1211 + $0x638] sm:$0xff]
        %v1476 = vld [vmem:[%s1211 + $0x640] sm:$0xff]
        %v1477 = vld [vmem:[%s1211 + $0x648] sm:$0xff]
        %v1478 = vld [vmem:[%s1211 + $0x650] sm:$0xff]
        %v1479 = vld [vmem:[%s1211 + $0x658] sm:$0xff]
        %v1480 = vld [vmem:[%s1211 + $0x660] sm:$0xff]
        %v1481 = vld [vmem:[%s1211 + $0x668] sm:$0xff]
        %v1482 = vld [vmem:[%s1211 + $0x670] sm:$0xff]
        %v1483 = vld [vmem:[%s1211 + $0x678] sm:$0xff]
        %v1484 = vld [vmem:[%s1211 + $0x680] sm:$0xff]
        %v1485 = vld [vmem:[%s1211 + $0x688] sm:$0xff]
        %v1486 = vld [vmem:[%s1211 + $0x690] sm:$0xff]
        %v1487 = vld [vmem:[%s1211 + $0x698] sm:$0xff]
        %v1488 = vld [vmem:[%s1211 + $0x6a0] sm:$0xff]
        %v1489 = vld [vmem:[%s1211 + $0x6a8] sm:$0xff]
        %v1490 = vld [vmem:[%s1211 + $0x6b0] sm:$0xff]
        %v1491 = vld [vmem:[%s1211 + $0x6b8] sm:$0xff]
        %v1492 = vld [vmem:[%s1211 + $0x6c0] sm:$0xff]
        %v1493 = vld [vmem:[%s1211 + $0x6c8] sm:$0xff]
        %v1494 = vld [vmem:[%s1211 + $0x6d0] sm:$0xff]
        %v1495 = vld [vmem:[%s1211 + $0x6d8] sm:$0xff]
        %v1496 = vld [vmem:[%s1211 + $0x6e0] sm:$0xff]
        %v1497 = vld [vmem:[%s1211 + $0x6e8] sm:$0xff]
        %v1498 = vld [vmem:[%s1211 + $0x6f0] sm:$0xff]
        %v1499 = vld [vmem:[%s1211 + $0x6f8] sm:$0xff]
        %v1500 = vld [vmem:[%s1211 + $0x700] sm:$0xff]
        %v1501 = vld [vmem:[%s1211 + $0x708] sm:$0xff]
        %v1502 = vld [vmem:[%s1211 + $0x710] sm:$0xff]
        %v1503 = vld [vmem:[%s1211 + $0x718] sm:$0xff]
        %v1504 = vld [vmem:[%s1211 + $0x720] sm:$0xff]
        %v1505 = vld [vmem:[%s1211 + $0x728] sm:$0xff]
        %v1506 = vld [vmem:[%s1211 + $0x730] sm:$0xff]
        %v1507 = vld [vmem:[%s1211 + $0x738] sm:$0xff]
        %v1508 = vld [vmem:[%s1211 + $0x740] sm:$0xff]
        %v1509 = vld [vmem:[%s1211 + $0x748] sm:$0xff]
        %v1510 = vld [vmem:[%s1211 + $0x750] sm:$0xff]
        %v1511 = vld [vmem:[%s1211 + $0x758] sm:$0xff]
        %v1512 = vld [vmem:[%s1211 + $0x760] sm:$0xff]
        %v1513 = vld [vmem:[%s1211 + $0x768] sm:$0xff]
        %v1514 = vld [vmem:[%s1211 + $0x770] sm:$0xff]
        %v1515 = vld [vmem:[%s1211 + $0x778] sm:$0xff]
        %v1516 = vld [vmem:[%s1248] sm:$0x1]
        %v1518 = vlaneseq
        %v1519 = vshrl.u32 %v1518, 7
        %v1520 = vsub.s32 0, %v1519
        %v1521 = vrot.slane %v1516, %v1520
        %1523 = vmatprep.subr.mxu0 0.0
        %1524 = vmatpush1.msra.mxu0 %v1276
        %1525 = vmatprep.subr.mxu0 0.0
        %1526 = vmatpush1.msra.mxu0 %v1277
        %1527 = vmatprep.subr.mxu0 0.0
        %1528 = vmatpush1.msra.mxu0 %v1278
        %1529 = vmatprep.subr.mxu0 0.0
        %1530 = vmatpush1.msra.mxu0 %v1279
        %1531 = vmatprep.subr.mxu0 0.0
        %1532 = vmatpush1.msra.mxu0 %v1280
        %1533 = vmatprep.subr.mxu0 0.0
        %1534 = vmatpush1.msra.mxu0 %v1281
        %1535 = vmatprep.subr.mxu0 0.0
        %1536 = vmatpush1.msra.mxu0 %v1282
        %1537 = vmatprep.subr.mxu0 0.0
        %1538 = vmatpush1.msra.mxu0 %v1283
        %1539 = vmatprep.subr.mxu0 0.0
        %1540 = vmatpush1.msra.mxu0 %v1284
        %1541 = vmatprep.subr.mxu0 0.0
        %1542 = vmatpush1.msra.mxu0 %v1285
        %1543 = vmatprep.subr.mxu0 0.0
        %1544 = vmatpush1.msra.mxu0 %v1286
        %1545 = vmatprep.subr.mxu0 0.0
        %1546 = vmatpush1.msra.mxu0 %v1287
        %1547 = vmatprep.subr.mxu0 0.0
        %1548 = vmatpush1.msra.mxu0 %v1288
        %1549 = vmatprep.subr.mxu0 0.0
        %1550 = vmatpush1.msra.mxu0 %v1289
        %1551 = vmatprep.subr.mxu0 0.0
        %1552 = vmatpush1.msra.mxu0 %v1290
        %1553 = vmatprep.subr.mxu0 0.0
        %1554 = vmatpush1.msra.mxu0 %v1291
        %1555 = vmatprep.subr.mxu0 0.0
        %1556 = vmatpush1.msra.mxu0 %v1292
        %1557 = vmatprep.subr.mxu0 0.0
        %1558 = vmatpush1.msra.mxu0 %v1293
        %1559 = vmatprep.subr.mxu0 0.0
        %1560 = vmatpush1.msra.mxu0 %v1294
        %1561 = vmatprep.subr.mxu0 0.0
        %1562 = vmatpush1.msra.mxu0 %v1295
        %1563 = vmatprep.subr.mxu0 0.0
        %1564 = vmatpush1.msra.mxu0 %v1296
        %1565 = vmatprep.subr.mxu0 0.0
        %1566 = vmatpush1.msra.mxu0 %v1297
        %1567 = vmatprep.subr.mxu0 0.0
        %1568 = vmatpush1.msra.mxu0 %v1298
        %1569 = vmatprep.subr.mxu0 0.0
        %1570 = vmatpush1.msra.mxu0 %v1299
        %1571 = vmatprep.subr.mxu0 0.0
        %1572 = vmatpush1.msra.mxu0 %v1300
        %1573 = vmatprep.subr.mxu0 0.0
        %1574 = vmatpush1.msra.mxu0 %v1301
        %1575 = vmatprep.subr.mxu0 0.0
        %1576 = vmatpush1.msra.mxu0 %v1302
        %1577 = vmatprep.subr.mxu0 0.0
        %1578 = vmatpush1.msra.mxu0 %v1303
        %1579 = vmatprep.subr.mxu0 0.0
        %1580 = vmatpush1.msra.mxu0 %v1304
        %1581 = vmatprep.subr.mxu0 0.0
        %1582 = vmatpush1.msra.mxu0 %v1305
        %1583 = vmatprep.subr.mxu0 0.0
        %1584 = vmatpush1.msra.mxu0 %v1306
        %1585 = vmatprep.subr.mxu0 0.0
        %1586 = vmatpush1.msra.mxu0 %v1307
        %1587 = vmatprep.mubr.f32.mxu0 %v1262
        %1588 = vmatmul.mubr.f32.gmra.mrb[0].mxu0 %v1261
        %v1589 = vpop.f32.mrb[0].mxu0
        %v1590 = vadd.f32 %v1521, %v1589
        %v1591 = vpop.f32.mrb[0].mxu0
        %1592 = vdwg.mxu0
        %1593 = vmatprep.subr.mxu0 0.0
        %1594 = vmatpush1.msra.mxu0 %v1308
        %1595 = vmatprep.subr.mxu0 0.0
        %1596 = vmatpush1.msra.mxu0 %v1309
        %1597 = vmatprep.subr.mxu0 0.0
        %1598 = vmatpush1.msra.mxu0 %v1310
        %1599 = vmatprep.subr.mxu0 0.0
        %1600 = vmatpush1.msra.mxu0 %v1311
        %1601 = vmatprep.subr.mxu0 0.0
        %1602 = vmatpush1.msra.mxu0 %v1312
        %1603 = vmatprep.subr.mxu0 0.0
        %1604 = vmatpush1.msra.mxu0 %v1313
        %1605 = vmatprep.subr.mxu0 0.0
        %1606 = vmatpush1.msra.mxu0 %v1314
        %1607 = vmatprep.subr.mxu0 0.0
        %1608 = vmatpush1.msra.mxu0 %v1315
        %1609 = vmatprep.subr.mxu0 0.0
        %1610 = vmatpush1.msra.mxu0 %v1316
        %1611 = vmatprep.subr.mxu0 0.0
        %1612 = vmatpush1.msra.mxu0 %v1317
        %1613 = vmatprep.subr.mxu0 0.0
        %1614 = vmatpush1.msra.mxu0 %v1318
        %1615 = vmatprep.subr.mxu0 0.0
        %1616 = vmatpush1.msra.mxu0 %v1319
        %1617 = vmatprep.subr.mxu0 0.0
        %1618 = vmatpush1.msra.mxu0 %v1320
        %1619 = vmatprep.subr.mxu0 0.0
        %1620 = vmatpush1.msra.mxu0 %v1321
        %1621 = vmatprep.subr.mxu0 0.0
        %1622 = vmatpush1.msra.mxu0 %v1322
        %1623 = vmatprep.subr.mxu0 0.0
        %1624 = vmatpush1.msra.mxu0 %v1323
        %1625 = vmatprep.subr.mxu0 0.0
        %1626 = vmatpush1.msra.mxu0 %v1324
        %1627 = vmatprep.subr.mxu0 0.0
        %1628 = vmatpush1.msra.mxu0 %v1325
        %1629 = vmatprep.subr.mxu0 0.0
        %1630 = vmatpush1.msra.mxu0 %v1326
        %1631 = vmatprep.subr.mxu0 0.0
        %1632 = vmatpush1.msra.mxu0 %v1327
        %1633 = vmatprep.subr.mxu0 0.0
        %1634 = vmatpush1.msra.mxu0 %v1328
        %1635 = vmatprep.subr.mxu0 0.0
        %1636 = vmatpush1.msra.mxu0 %v1329
        %1637 = vmatprep.subr.mxu0 0.0
        %1638 = vmatpush1.msra.mxu0 %v1330
        %1639 = vmatprep.subr.mxu0 0.0
        %1640 = vmatpush1.msra.mxu0 %v1331
        %1641 = vmatprep.subr.mxu0 0.0
        %1642 = vmatpush1.msra.mxu0 %v1332
        %1643 = vmatprep.subr.mxu0 0.0
        %1644 = vmatpush1.msra.mxu0 %v1333
        %1645 = vmatprep.subr.mxu0 0.0
        %1646 = vmatpush1.msra.mxu0 %v1334
        %1647 = vmatprep.subr.mxu0 0.0
        %1648 = vmatpush1.msra.mxu0 %v1335
        %1649 = vmatprep.subr.mxu0 0.0
        %1650 = vmatpush1.msra.mxu0 %v1336
        %1651 = vmatprep.subr.mxu0 0.0
        %1652 = vmatpush1.msra.mxu0 %v1337
        %1653 = vmatprep.subr.mxu0 0.0
        %1654 = vmatpush1.msra.mxu0 %v1338
        %1655 = vmatprep.subr.mxu0 0.0
        %1656 = vmatpush1.msra.mxu0 %v1339
        %1657 = vmatprep.mubr.f32.mxu0 %v1264
        %1658 = vmatmul.mubr.f32.gmra.mrb[0].mxu0 %v1263
        %v1659 = vpop.f32.mrb[0].mxu0
        %v1660 = vadd.f32 %v1590, %v1659
        %v1661 = vpop.f32.mrb[0].mxu0
        %1662 = vdwg.mxu0
        %1663 = vmatprep.subr.mxu0 0.0
        %1664 = vmatpush1.msra.mxu0 %v1340
        %1665 = vmatprep.subr.mxu0 0.0
        %1666 = vmatpush1.msra.mxu0 %v1341
        %1667 = vmatprep.subr.mxu0 0.0
        %1668 = vmatpush1.msra.mxu0 %v1342
        %1669 = vmatprep.subr.mxu0 0.0
        %1670 = vmatpush1.msra.mxu0 %v1343
        %1671 = vmatprep.subr.mxu0 0.0
        %1672 = vmatpush1.msra.mxu0 %v1344
        %1673 = vmatprep.subr.mxu0 0.0
        %1674 = vmatpush1.msra.mxu0 %v1345
        %1675 = vmatprep.subr.mxu0 0.0
        %1676 = vmatpush1.msra.mxu0 %v1346
        %1677 = vmatprep.subr.mxu0 0.0
        %1678 = vmatpush1.msra.mxu0 %v1347
        %1679 = vmatprep.subr.mxu0 0.0
        %1680 = vmatpush1.msra.mxu0 %v1348
        %1681 = vmatprep.subr.mxu0 0.0
        %1682 = vmatpush1.msra.mxu0 %v1349
        %1683 = vmatprep.subr.mxu0 0.0
        %1684 = vmatpush1.msra.mxu0 %v1350
        %1685 = vmatprep.subr.mxu0 0.0
        %1686 = vmatpush1.msra.mxu0 %v1351
        %1687 = vmatprep.subr.mxu0 0.0
        %1688 = vmatpush1.msra.mxu0 %v1352
        %1689 = vmatprep.subr.mxu0 0.0
        %1690 = vmatpush1.msra.mxu0 %v1353
        %1691 = vmatprep.subr.mxu0 0.0
        %1692 = vmatpush1.msra.mxu0 %v1354
        %1693 = vmatprep.subr.mxu0 0.0
        %1694 = vmatpush1.msra.mxu0 %v1355
        %1695 = vmatprep.subr.mxu0 0.0
        %1696 = vmatpush1.msra.mxu0 %v1356
        %1697 = vmatprep.subr.mxu0 0.0
        %1698 = vmatpush1.msra.mxu0 %v1357
        %1699 = vmatprep.subr.mxu0 0.0
        %1700 = vmatpush1.msra.mxu0 %v1358
        %1701 = vmatprep.subr.mxu0 0.0
        %1702 = vmatpush1.msra.mxu0 %v1359
        %1703 = vmatprep.subr.mxu0 0.0
        %1704 = vmatpush1.msra.mxu0 %v1360
        %1705 = vmatprep.subr.mxu0 0.0
        %1706 = vmatpush1.msra.mxu0 %v1361
        %1707 = vmatprep.subr.mxu0 0.0
        %1708 = vmatpush1.msra.mxu0 %v1362
        %1709 = vmatprep.subr.mxu0 0.0
        %1710 = vmatpush1.msra.mxu0 %v1363
        %1711 = vmatprep.subr.mxu0 0.0
        %1712 = vmatpush1.msra.mxu0 %v1364
        %1713 = vmatprep.subr.mxu0 0.0
        %1714 = vmatpush1.msra.mxu0 %v1365
        %1715 = vmatprep.subr.mxu0 0.0
        %1716 = vmatpush1.msra.mxu0 %v1366
        %1717 = vmatprep.subr.mxu0 0.0
        %1718 = vmatpush1.msra.mxu0 %v1367
        %1719 = vmatprep.subr.mxu0 0.0
        %1720 = vmatpush1.msra.mxu0 %v1368
        %1721 = vmatprep.subr.mxu0 0.0
        %1722 = vmatpush1.msra.mxu0 %v1369
        %1723 = vmatprep.subr.mxu0 0.0
        %1724 = vmatpush1.msra.mxu0 %v1370
        %1725 = vmatprep.subr.mxu0 0.0
        %1726 = vmatpush1.msra.mxu0 %v1371
        %1727 = vmatprep.mubr.f32.mxu0 %v1266
        %1728 = vmatmul.mubr.f32.gmra.mrb[0].mxu0 %v1265
        %v1729 = vpop.f32.mrb[0].mxu0
        %v1730 = vadd.f32 %v1660, %v1729
        %v1731 = vpop.f32.mrb[0].mxu0
        %1732 = vdwg.mxu0
        %1733 = vmatprep.subr.mxu0 0.0
        %1734 = vmatpush1.msra.mxu0 %v1372
        %1735 = vmatprep.subr.mxu0 0.0
        %1736 = vmatpush1.msra.mxu0 %v1373
        %1737 = vmatprep.subr.mxu0 0.0
        %1738 = vmatpush1.msra.mxu0 %v1374
        %1739 = vmatprep.subr.mxu0 0.0
        %1740 = vmatpush1.msra.mxu0 %v1375
        %1741 = vmatprep.subr.mxu0 0.0
        %1742 = vmatpush1.msra.mxu0 %v1376
        %1743 = vmatprep.subr.mxu0 0.0
        %1744 = vmatpush1.msra.mxu0 %v1377
        %1745 = vmatprep.subr.mxu0 0.0
        %1746 = vmatpush1.msra.mxu0 %v1378
        %1747 = vmatprep.subr.mxu0 0.0
        %1748 = vmatpush1.msra.mxu0 %v1379
        %1749 = vmatprep.subr.mxu0 0.0
        %1750 = vmatpush1.msra.mxu0 %v1380
        %1751 = vmatprep.subr.mxu0 0.0
        %1752 = vmatpush1.msra.mxu0 %v1381
        %1753 = vmatprep.subr.mxu0 0.0
        %1754 = vmatpush1.msra.mxu0 %v1382
        %1755 = vmatprep.subr.mxu0 0.0
        %1756 = vmatpush1.msra.mxu0 %v1383
        %1757 = vmatprep.subr.mxu0 0.0
        %1758 = vmatpush1.msra.mxu0 %v1384
        %1759 = vmatprep.subr.mxu0 0.0
        %1760 = vmatpush1.msra.mxu0 %v1385
        %1761 = vmatprep.subr.mxu0 0.0
        %1762 = vmatpush1.msra.mxu0 %v1386
        %1763 = vmatprep.subr.mxu0 0.0
        %1764 = vmatpush1.msra.mxu0 %v1387
        %1765 = vmatprep.subr.mxu0 0.0
        %1766 = vmatpush1.msra.mxu0 %v1388
        %1767 = vmatprep.subr.mxu0 0.0
        %1768 = vmatpush1.msra.mxu0 %v1389
        %1769 = vmatprep.subr.mxu0 0.0
        %1770 = vmatpush1.msra.mxu0 %v1390
        %1771 = vmatprep.subr.mxu0 0.0
        %1772 = vmatpush1.msra.mxu0 %v1391
        %1773 = vmatprep.subr.mxu0 0.0
        %1774 = vmatpush1.msra.mxu0 %v1392
        %1775 = vmatprep.subr.mxu0 0.0
        %1776 = vmatpush1.msra.mxu0 %v1393
        %1777 = vmatprep.subr.mxu0 0.0
        %1778 = vmatpush1.msra.mxu0 %v1394
        %1779 = vmatprep.subr.mxu0 0.0
        %1780 = vmatpush1.msra.mxu0 %v1395
        %1781 = vmatprep.subr.mxu0 0.0
        %1782 = vmatpush1.msra.mxu0 %v1396
        %1783 = vmatprep.subr.mxu0 0.0
        %1784 = vmatpush1.msra.mxu0 %v1397
        %1785 = vmatprep.subr.mxu0 0.0
        %1786 = vmatpush1.msra.mxu0 %v1398
        %1787 = vmatprep.subr.mxu0 0.0
        %1788 = vmatpush1.msra.mxu0 %v1399
        %1789 = vmatprep.subr.mxu0 0.0
        %1790 = vmatpush1.msra.mxu0 %v1400
        %1791 = vmatprep.subr.mxu0 0.0
        %1792 = vmatpush1.msra.mxu0 %v1401
        %1793 = vmatprep.subr.mxu0 0.0
        %1794 = vmatpush1.msra.mxu0 %v1402
        %1795 = vmatprep.subr.mxu0 0.0
        %1796 = vmatpush1.msra.mxu0 %v1403
        %1797 = vmatprep.mubr.f32.mxu0 %v1268
        %1798 = vmatmul.mubr.f32.gmra.mrb[0].mxu0 %v1267
        %v1799 = vpop.f32.mrb[0].mxu0
        %v1800 = vadd.f32 %v1730, %v1799
        %v1801 = vpop.f32.mrb[0].mxu0
        %1802 = vdwg.mxu0
        %1803 = vmatprep.subr.mxu0 0.0
        %1804 = vmatpush1.msra.mxu0 %v1404
        %1805 = vmatprep.subr.mxu0 0.0
        %1806 = vmatpush1.msra.mxu0 %v1405
        %1807 = vmatprep.subr.mxu0 0.0
        %1808 = vmatpush1.msra.mxu0 %v1406
        %1809 = vmatprep.subr.mxu0 0.0
        %1810 = vmatpush1.msra.mxu0 %v1407
        %1811 = vmatprep.subr.mxu0 0.0
        %1812 = vmatpush1.msra.mxu0 %v1408
        %1813 = vmatprep.subr.mxu0 0.0
        %1814 = vmatpush1.msra.mxu0 %v1409
        %1815 = vmatprep.subr.mxu0 0.0
        %1816 = vmatpush1.msra.mxu0 %v1410
        %1817 = vmatprep.subr.mxu0 0.0
        %1818 = vmatpush1.msra.mxu0 %v1411
        %1819 = vmatprep.subr.mxu0 0.0
        %1820 = vmatpush1.msra.mxu0 %v1412
        %1821 = vmatprep.subr.mxu0 0.0
        %1822 = vmatpush1.msra.mxu0 %v1413
        %1823 = vmatprep.subr.mxu0 0.0
        %1824 = vmatpush1.msra.mxu0 %v1414
        %1825 = vmatprep.subr.mxu0 0.0
        %1826 = vmatpush1.msra.mxu0 %v1415
        %1827 = vmatprep.subr.mxu0 0.0
        %1828 = vmatpush1.msra.mxu0 %v1416
        %1829 = vmatprep.subr.mxu0 0.0
        %1830 = vmatpush1.msra.mxu0 %v1417
        %1831 = vmatprep.subr.mxu0 0.0
        %1832 = vmatpush1.msra.mxu0 %v1418
        %1833 = vmatprep.subr.mxu0 0.0
        %1834 = vmatpush1.msra.mxu0 %v1419
        %1835 = vmatprep.subr.mxu0 0.0
        %1836 = vmatpush1.msra.mxu0 %v1420
        %1837 = vmatprep.subr.mxu0 0.0
        %1838 = vmatpush1.msra.mxu0 %v1421
        %1839 = vmatprep.subr.mxu0 0.0
        %1840 = vmatpush1.msra.mxu0 %v1422
        %1841 = vmatprep.subr.mxu0 0.0
        %1842 = vmatpush1.msra.mxu0 %v1423
        %1843 = vmatprep.subr.mxu0 0.0
        %1844 = vmatpush1.msra.mxu0 %v1424
        %1845 = vmatprep.subr.mxu0 0.0
        %1846 = vmatpush1.msra.mxu0 %v1425
        %1847 = vmatprep.subr.mxu0 0.0
        %1848 = vmatpush1.msra.mxu0 %v1426
        %1849 = vmatprep.subr.mxu0 0.0
        %1850 = vmatpush1.msra.mxu0 %v1427
        %1851 = vmatprep.subr.mxu0 0.0
        %1852 = vmatpush1.msra.mxu0 %v1428
        %1853 = vmatprep.subr.mxu0 0.0
        %1854 = vmatpush1.msra.mxu0 %v1429
        %1855 = vmatprep.subr.mxu0 0.0
        %1856 = vmatpush1.msra.mxu0 %v1430
        %1857 = vmatprep.subr.mxu0 0.0
        %1858 = vmatpush1.msra.mxu0 %v1431
        %1859 = vmatprep.subr.mxu0 0.0
        %1860 = vmatpush1.msra.mxu0 %v1432
        %1861 = vmatprep.subr.mxu0 0.0
        %1862 = vmatpush1.msra.mxu0 %v1433
        %1863 = vmatprep.subr.mxu0 0.0
        %1864 = vmatpush1.msra.mxu0 %v1434
        %1865 = vmatprep.subr.mxu0 0.0
        %1866 = vmatpush1.msra.mxu0 %v1435
        %1867 = vmatprep.mubr.f32.mxu0 %v1270
        %1868 = vmatmul.mubr.f32.gmra.mrb[0].mxu0 %v1269
        %v1869 = vpop.f32.mrb[0].mxu0
        %v1870 = vadd.f32 %v1800, %v1869
        %v1871 = vpop.f32.mrb[0].mxu0
        %1872 = vdwg.mxu0
        %1873 = vmatprep.subr.mxu0 0.0
        %1874 = vmatpush1.msra.mxu0 %v1436
        %1875 = vmatprep.subr.mxu0 0.0
        %1876 = vmatpush1.msra.mxu0 %v1437
        %1877 = vmatprep.subr.mxu0 0.0
        %1878 = vmatpush1.msra.mxu0 %v1438
        %1879 = vmatprep.subr.mxu0 0.0
        %1880 = vmatpush1.msra.mxu0 %v1439
        %1881 = vmatprep.subr.mxu0 0.0
        %1882 = vmatpush1.msra.mxu0 %v1440
        %1883 = vmatprep.subr.mxu0 0.0
        %1884 = vmatpush1.msra.mxu0 %v1441
        %1885 = vmatprep.subr.mxu0 0.0
        %1886 = vmatpush1.msra.mxu0 %v1442
        %1887 = vmatprep.subr.mxu0 0.0
        %1888 = vmatpush1.msra.mxu0 %v1443
        %1889 = vmatprep.subr.mxu0 0.0
        %1890 = vmatpush1.msra.mxu0 %v1444
        %1891 = vmatprep.subr.mxu0 0.0
        %1892 = vmatpush1.msra.mxu0 %v1445
        %1893 = vmatprep.subr.mxu0 0.0
        %1894 = vmatpush1.msra.mxu0 %v1446
        %1895 = vmatprep.subr.mxu0 0.0
        %1896 = vmatpush1.msra.mxu0 %v1447
        %1897 = vmatprep.subr.mxu0 0.0
        %1898 = vmatpush1.msra.mxu0 %v1448
        %1899 = vmatprep.subr.mxu0 0.0
        %1900 = vmatpush1.msra.mxu0 %v1449
        %1901 = vmatprep.subr.mxu0 0.0
        %1902 = vmatpush1.msra.mxu0 %v1450
        %1903 = vmatprep.subr.mxu0 0.0
        %1904 = vmatpush1.msra.mxu0 %v1451
        %1905 = vmatprep.subr.mxu0 0.0
        %1906 = vmatpush1.msra.mxu0 %v1452
        %1907 = vmatprep.subr.mxu0 0.0
        %1908 = vmatpush1.msra.mxu0 %v1453
        %1909 = vmatprep.subr.mxu0 0.0
        %1910 = vmatpush1.msra.mxu0 %v1454
        %1911 = vmatprep.subr.mxu0 0.0
        %1912 = vmatpush1.msra.mxu0 %v1455
        %1913 = vmatprep.subr.mxu0 0.0
        %1914 = vmatpush1.msra.mxu0 %v1456
        %1915 = vmatprep.subr.mxu0 0.0
        %1916 = vmatpush1.msra.mxu0 %v1457
        %1917 = vmatprep.subr.mxu0 0.0
        %1918 = vmatpush1.msra.mxu0 %v1458
        %1919 = vmatprep.subr.mxu0 0.0
        %1920 = vmatpush1.msra.mxu0 %v1459
        %1921 = vmatprep.subr.mxu0 0.0
        %1922 = vmatpush1.msra.mxu0 %v1460
        %1923 = vmatprep.subr.mxu0 0.0
        %1924 = vmatpush1.msra.mxu0 %v1461
        %1925 = vmatprep.subr.mxu0 0.0
        %1926 = vmatpush1.msra.mxu0 %v1462
        %1927 = vmatprep.subr.mxu0 0.0
        %1928 = vmatpush1.msra.mxu0 %v1463
        %1929 = vmatprep.subr.mxu0 0.0
        %1930 = vmatpush1.msra.mxu0 %v1464
        %1931 = vmatprep.subr.mxu0 0.0
        %1932 = vmatpush1.msra.mxu0 %v1465
        %1933 = vmatprep.subr.mxu0 0.0
        %1934 = vmatpush1.msra.mxu0 %v1466
        %1935 = vmatprep.subr.mxu0 0.0
        %1936 = vmatpush1.msra.mxu0 %v1467
        %1937 = vmatprep.mubr.f32.mxu0 %v1272
        %1938 = vmatmul.mubr.f32.gmra.mrb[0].mxu0 %v1271
        %v1939 = vpop.f32.mrb[0].mxu0
        %v1940 = vadd.f32 %v1870, %v1939
        %v1941 = vpop.f32.mrb[0].mxu0
        %1942 = vdwg.mxu0
        %1943 = vmatprep.subr.mxu0 0.0
        %1944 = vmatpush1.msra.mxu0 %v1468
        %1945 = vmatprep.subr.mxu0 0.0
        %1946 = vmatpush1.msra.mxu0 %v1469
        %1947 = vmatprep.subr.mxu0 0.0
        %1948 = vmatpush1.msra.mxu0 %v1470
        %1949 = vmatprep.subr.mxu0 0.0
        %1950 = vmatpush1.msra.mxu0 %v1471
        %1951 = vmatprep.subr.mxu0 0.0
        %1952 = vmatpush1.msra.mxu0 %v1472
        %1953 = vmatprep.subr.mxu0 0.0
        %1954 = vmatpush1.msra.mxu0 %v1473
        %1955 = vmatprep.subr.mxu0 0.0
        %1956 = vmatpush1.msra.mxu0 %v1474
        %1957 = vmatprep.subr.mxu0 0.0
        %1958 = vmatpush1.msra.mxu0 %v1475
        %1959 = vmatprep.subr.mxu0 0.0
        %1960 = vmatpush1.msra.mxu0 %v1476
        %1961 = vmatprep.subr.mxu0 0.0
        %1962 = vmatpush1.msra.mxu0 %v1477
        %1963 = vmatprep.subr.mxu0 0.0
        %1964 = vmatpush1.msra.mxu0 %v1478
        %1965 = vmatprep.subr.mxu0 0.0
        %1966 = vmatpush1.msra.mxu0 %v1479
        %1967 = vmatprep.subr.mxu0 0.0
        %1968 = vmatpush1.msra.mxu0 %v1480
        %1969 = vmatprep.subr.mxu0 0.0
        %1970 = vmatpush1.msra.mxu0 %v1481
        %1971 = vmatprep.subr.mxu0 0.0
        %1972 = vmatpush1.msra.mxu0 %v1482
        %1973 = vmatprep.subr.mxu0 0.0
        %1974 = vmatpush1.msra.mxu0 %v1483
        %1975 = vmatprep.subr.mxu0 0.0
        %1976 = vmatpush1.msra.mxu0 %v1484
        %1977 = vmatprep.subr.mxu0 0.0
        %1978 = vmatpush1.msra.mxu0 %v1485
        %1979 = vmatprep.subr.mxu0 0.0
        %1980 = vmatpush1.msra.mxu0 %v1486
        %1981 = vmatprep.subr.mxu0 0.0
        %1982 = vmatpush1.msra.mxu0 %v1487
        %1983 = vmatprep.subr.mxu0 0.0
        %1984 = vmatpush1.msra.mxu0 %v1488
        %1985 = vmatprep.subr.mxu0 0.0
        %1986 = vmatpush1.msra.mxu0 %v1489
        %1987 = vmatprep.subr.mxu0 0.0
        %1988 = vmatpush1.msra.mxu0 %v1490
        %1989 = vmatprep.subr.mxu0 0.0
        %1990 = vmatpush1.msra.mxu0 %v1491
        %1991 = vmatprep.subr.mxu0 0.0
        %1992 = vmatpush1.msra.mxu0 %v1492
        %1993 = vmatprep.subr.mxu0 0.0
        %1994 = vmatpush1.msra.mxu0 %v1493
        %1995 = vmatprep.subr.mxu0 0.0
        %1996 = vmatpush1.msra.mxu0 %v1494
        %1997 = vmatprep.subr.mxu0 0.0
        %1998 = vmatpush1.msra.mxu0 %v1495
        %1999 = vmatprep.subr.mxu0 0.0
        %2000 = vmatpush1.msra.mxu0 %v1496
        %2001 = vmatprep.subr.mxu0 0.0
        %2002 = vmatpush1.msra.mxu0 %v1497
        %2003 = vmatprep.subr.mxu0 0.0
        %2004 = vmatpush1.msra.mxu0 %v1498
        %2005 = vmatprep.subr.mxu0 0.0
        %2006 = vmatpush1.msra.mxu0 %v1499
        %2007 = vmatprep.mubr.f32.mxu0 %v1274
        %2008 = vmatmul.mubr.f32.gmra.mrb[0].mxu0 %v1273
        %v2009 = vpop.f32.mrb[0].mxu0
        %v2010 = vadd.f32 %v1940, %v2009
        %v2011 = vpop.f32.mrb[0].mxu0
        %2012 = vdwg.mxu0
        %2013 = vmatprep.subr.mxu0 0.0
        %2014 = vmatpush1.msra.mxu0 %v1500
        %2015 = vmatprep.subr.mxu0 0.0
        %2016 = vmatpush1.msra.mxu0 %v1501
        %2017 = vmatprep.subr.mxu0 0.0
        %2018 = vmatpush1.msra.mxu0 %v1502
        %2019 = vmatprep.subr.mxu0 0.0
        %2020 = vmatpush1.msra.mxu0 %v1503
        %2021 = vmatprep.subr.mxu0 0.0
        %2022 = vmatpush1.msra.mxu0 %v1504
        %2023 = vmatprep.subr.mxu0 0.0
        %2024 = vmatpush1.msra.mxu0 %v1505
        %2025 = vmatprep.subr.mxu0 0.0
        %2026 = vmatpush1.msra.mxu0 %v1506
        %2027 = vmatprep.subr.mxu0 0.0
        %2028 = vmatpush1.msra.mxu0 %v1507
        %2029 = vmatprep.subr.mxu0 0.0
        %2030 = vmatpush1.msra.mxu0 %v1508
        %2031 = vmatprep.subr.mxu0 0.0
        %2032 = vmatpush1.msra.mxu0 %v1509
        %2033 = vmatprep.subr.mxu0 0.0
        %2034 = vmatpush1.msra.mxu0 %v1510
        %2035 = vmatprep.subr.mxu0 0.0
        %2036 = vmatpush1.msra.mxu0 %v1511
        %2037 = vmatprep.subr.mxu0 0.0
        %2038 = vmatpush1.msra.mxu0 %v1512
        %2039 = vmatprep.subr.mxu0 0.0
        %2040 = vmatpush1.msra.mxu0 %v1513
        %2041 = vmatprep.subr.mxu0 0.0
        %2042 = vmatpush1.msra.mxu0 %v1514
        %2043 = vmatprep.subr.mxu0 0.0
        %2044 = vmatpush1.msra.mxu0 %v1515
        %2045 = vmatprep.subr.mxu0 0.0
        %2046 = vmatpush1.msra.mxu0 0.0
        %2047 = vmatprep.subr.mxu0 0.0
        %2048 = vmatpush1.msra.mxu0 0.0
        %2049 = vmatprep.subr.mxu0 0.0
        %2050 = vmatpush1.msra.mxu0 0.0
        %2051 = vmatprep.subr.mxu0 0.0
        %2052 = vmatpush1.msra.mxu0 0.0
        %2053 = vmatprep.subr.mxu0 0.0
        %2054 = vmatpush1.msra.mxu0 0.0
        %2055 = vmatprep.subr.mxu0 0.0
        %2056 = vmatpush1.msra.mxu0 0.0
        %2057 = vmatprep.subr.mxu0 0.0
        %2058 = vmatpush1.msra.mxu0 0.0
        %2059 = vmatprep.subr.mxu0 0.0
        %2060 = vmatpush1.msra.mxu0 0.0
        %2061 = vmatprep.subr.mxu0 0.0
        %2062 = vmatpush1.msra.mxu0 0.0
        %2063 = vmatprep.subr.mxu0 0.0
        %2064 = vmatpush1.msra.mxu0 0.0
        %2065 = vmatprep.subr.mxu0 0.0
        %2066 = vmatpush1.msra.mxu0 0.0
        %2067 = vmatprep.subr.mxu0 0.0
        %2068 = vmatpush1.msra.mxu0 0.0
        %2069 = vmatprep.subr.mxu0 0.0
        %2070 = vmatpush1.msra.mxu0 0.0
        %2071 = vmatprep.subr.mxu0 0.0
        %2072 = vmatpush1.msra.mxu0 0.0
        %2073 = vmatprep.subr.mxu0 0.0
        %2074 = vmatpush1.msra.mxu0 0.0
        %2075 = vmatprep.subr.mxu0 0.0
        %2076 = vmatpush1.msra.mxu0 0.0
        %2077 = vmatprep.mubr.f32.mxu0 0.0
        %2078 = vmatmul.mubr.f32.gmra.mrb[0].mxu0 %v1275
        %v2079 = vpop.f32.mrb[0].mxu0
        %v2080 = vadd.f32 %v2010, %v2079
        %v2081 = vpop.f32.mrb[0].mxu0
        %2082 = vdwg.mxu0
        %v2083 = vmax.f32 %v2080, 0.0
        %v2084 = vld [vmem:[%s1253] sm:$0xff]
        %v2085 = vld [vmem:[%s1253 + $0x8] sm:$0xff]
        %v2086 = vld [vmem:[%s1253 + $0x10] sm:$0xff]
        %v2087 = vld [vmem:[%s1253 + $0x18] sm:$0xff]
        %v2088 = vld [vmem:[%s1253 + $0x20] sm:$0xff]
        %v2089 = vld [vmem:[%s1253 + $0x28] sm:$0xff]
        %v2090 = vld [vmem:[%s1253 + $0x30] sm:$0xff]
        %v2091 = vld [vmem:[%s1253 + $0x38] sm:$0xff]
        %v2092 = vld [vmem:[%s1253 + $0x40] sm:$0xff]
        %v2093 = vld [vmem:[%s1253 + $0x48] sm:$0xff]
        %v2094 = vld [vmem:[%s1253 + $0x50] sm:$0xff]
        %v2095 = vld [vmem:[%s1253 + $0x58] sm:$0xff]
        %v2096 = vld [vmem:[%s1253 + $0x60] sm:$0xff]
        %v2097 = vld [vmem:[%s1253 + $0x68] sm:$0xff]
        %v2098 = vld [vmem:[%s1253 + $0x70] sm:$0xff]
        %v2099 = vld [vmem:[%s1253 + $0x78] sm:$0xff]
        %v2100 = vld [vmem:[%s1256] sm:$0x1]
        %v2102 = vlaneseq
        %v2103 = vshrl.u32 %v2102, 7
        %v2104 = vsub.s32 0, %v2103
        %v2105 = vrot.slane %v2100, %v2104
        %2107 = vmatprep.subr.mxu0 0.0
        %2108 = vmatpush1.msra.mxu0 %v2084
        %2109 = vmatprep.subr.mxu0 0.0
        %2110 = vmatpush1.msra.mxu0 %v2085
        %2111 = vmatprep.subr.mxu0 0.0
        %2112 = vmatpush1.msra.mxu0 %v2086
        %2113 = vmatprep.subr.mxu0 0.0
        %2114 = vmatpush1.msra.mxu0 %v2087
        %2115 = vmatprep.subr.mxu0 0.0
        %2116 = vmatpush1.msra.mxu0 %v2088
        %2117 = vmatprep.subr.mxu0 0.0
        %2118 = vmatpush1.msra.mxu0 %v2089
        %2119 = vmatprep.subr.mxu0 0.0
        %2120 = vmatpush1.msra.mxu0 %v2090
        %2121 = vmatprep.subr.mxu0 0.0
        %2122 = vmatpush1.msra.mxu0 %v2091
        %2123 = vmatprep.subr.mxu0 0.0
        %2124 = vmatpush1.msra.mxu0 %v2092
        %2125 = vmatprep.subr.mxu0 0.0
        %2126 = vmatpush1.msra.mxu0 %v2093
        %2127 = vmatprep.subr.mxu0 0.0
        %2128 = vmatpush1.msra.mxu0 %v2094
        %2129 = vmatprep.subr.mxu0 0.0
        %2130 = vmatpush1.msra.mxu0 %v2095
        %2131 = vmatprep.subr.mxu0 0.0
        %2132 = vmatpush1.msra.mxu0 %v2096
        %2133 = vmatprep.subr.mxu0 0.0
        %2134 = vmatpush1.msra.mxu0 %v2097
        %2135 = vmatprep.subr.mxu0 0.0
        %2136 = vmatpush1.msra.mxu0 %v2098
        %2137 = vmatprep.subr.mxu0 0.0
        %2138 = vmatpush1.msra.mxu0 %v2099
        %2139 = vmatprep.subr.mxu0 0.0
        %2140 = vmatpush1.msra.mxu0 0.0
        %2141 = vmatprep.subr.mxu0 0.0
        %2142 = vmatpush1.msra.mxu0 0.0
        %2143 = vmatprep.subr.mxu0 0.0
        %2144 = vmatpush1.msra.mxu0 0.0
        %2145 = vmatprep.subr.mxu0 0.0
        %2146 = vmatpush1.msra.mxu0 0.0
        %2147 = vmatprep.subr.mxu0 0.0
        %2148 = vmatpush1.msra.mxu0 0.0
        %2149 = vmatprep.subr.mxu0 0.0
        %2150 = vmatpush1.msra.mxu0 0.0
        %2151 = vmatprep.subr.mxu0 0.0
        %2152 = vmatpush1.msra.mxu0 0.0
        %2153 = vmatprep.subr.mxu0 0.0
        %2154 = vmatpush1.msra.mxu0 0.0
        %2155 = vmatprep.subr.mxu0 0.0
        %2156 = vmatpush1.msra.mxu0 0.0
        %2157 = vmatprep.subr.mxu0 0.0
        %2158 = vmatpush1.msra.mxu0 0.0
        %2159 = vmatprep.subr.mxu0 0.0
        %2160 = vmatpush1.msra.mxu0 0.0
        %2161 = vmatprep.subr.mxu0 0.0
        %2162 = vmatpush1.msra.mxu0 0.0
        %2163 = vmatprep.subr.mxu0 0.0
        %2164 = vmatpush1.msra.mxu0 0.0
        %2165 = vmatprep.subr.mxu0 0.0
        %2166 = vmatpush1.msra.mxu0 0.0
        %2167 = vmatprep.subr.mxu0 0.0
        %2168 = vmatpush1.msra.mxu0 0.0
        %2169 = vmatprep.subr.mxu0 0.0
        %2170 = vmatpush1.msra.mxu0 0.0
        %2171 = vmatprep.mubr.f32.mxu0 0.0
        %2172 = vmatmul.mubr.f32.gmra.mrb[0].mxu0 %v2083
        %v2173 = vpop.f32.mrb[0].mxu0
        %v2174 = vadd.f32 %v2105, %v2173
        %v2175 = vpop.f32.mrb[0].mxu0
        %2176 = vdwg.mxu0
        %2177 = vst [vmem:[%s1260] sm:$0xff] %v2174
        %p2178 = scmp.lt.s32.totalorder %s16, 2
        %s2179 = scalar_select %p2178, %s16, 2
        %s2180 = smul.addr %s2179, 8
        %s2181 = scalar_lea.vmem %s5, %s2180
        // Predicated region
        $region79: #{metanet_forward.1} parent=73 // pred_check
          %p2182 = pneg %p159
        $region80: #{metanet_forward.1} parent=73 // pred_check_branch
          %2184 = sbr.rel (%p2182) target = $region82
        $region81: #{metanet_forward.1} parent=73 // pred_region
          _
        $region82: #{metanet_forward.1} parent=73 // pred_fallthru
          _
      $region74: #{metanet_forward.1} parent=5 // pred_fallthru
        _
      %p2185 = scmp.le.s32.totalorder 2, %s11
      // Predicated region
      $region83: #{metanet_forward.1} parent=5 // pred_check
        %p2186 = pneg %p2185
      $region84: #{metanet_forward.1} parent=5 // pred_check_branch
        %2188 = sbr.rel (%p2186) target = $region86
      $region85: #{metanet_forward.1} parent=5 // pred_region
        %s2189 = ssub.s32 %s11, 2
        // Predicated region
        $region87: #{metanet_forward.1} parent=85 // pred_check
          %p2190 = pneg %p165
        $region88: #{metanet_forward.1} parent=85 // pred_check_branch
          %2192 = sbr.rel (%p2190) target = $region90
        $region89: #{metanet_forward.1} parent=85 // pred_region
          %p2193 = scmp.lt.s32.totalorder %s17, 2
          %s2194 = scalar_select %p2193, %s17, 2
          %s2195 = smul.addr %s2194, 8
          %s2196 = scalar_lea.vmem %s5, %s2195
        $region90: #{metanet_forward.1} parent=85 // pred_fallthru
          _
      $region86: #{metanet_forward.1} parent=5 // pred_fallthru
        _
    $region6: #{metanet_forward.1} parent=1 // loop_footer
      %s15 = sadd.s32 1, %s11
    $region7: #{metanet_forward.1} parent=1 // loop_footer_branch
      %10 = sbr.rel target = $region3
    $region8: #{metanet_forward.1} parent=1 // loop_exit
      _

</llo_original>
